<compile_context>
chip_gen: v6e
topology: v6e:2x2x1
jax: 0.10.0
libtpu: 0.0.40
codegen_flags: <defaults>
</compile_context>

<pallas_src>
import math

import jax
import jax.numpy as jnp
from jax import lax
from jax.experimental import pallas as pl
from jax.experimental.pallas import tpu as pltpu


def gcn_kernel(scal_ref,                      # SMEM (4,): [w1g, b1g, w2g, b2g]
               x_ref, adj_ref, adjT_ref,
               w1_ref, b1_ref, w2_ref, b2_ref,
               w3_ref, b3_ref, w4_ref, b4_ref,
               o_ref):
    w1g = scal_ref[0]
    b1g = scal_ref[1]
    w2g = scal_ref[2]
    b2g = scal_ref[3]

    x = x_ref[...]                                   # (N, F) f32
    adj = adj_ref[...]                               # (N, N) f32
    adjT = adjT_ref[...]                             # (N, N) f32  (= adj.T)

    # x = x.sum(1).unsqueeze(1)
    s_col = jnp.sum(x, axis=1, keepdims=True)        # (N, 1)

    # gc1: relu(adj @ (s * W1) + b1)   (W1, b1 are scalars: in=out=1)
    # (adjT * s_col)[j, i] = adj[i, j] * s[j]; reduce j over sublanes -> row.
    h1_row = jnp.sum(adjT * (s_col * w1g), axis=0, keepdims=True) + b1g   # (1, N)
    h1_row = jnp.maximum(h1_row, 0.0)

    # F.dropout: eval-mode identity.
    # TODO(synk): training-mode stochastic dropout not implemented (deterministic kernel).

    # gc2: relu(adj @ (h1 * W2) + b2)
    # (adj * h1_row)[i, j] = adj[i, j] * h1[j]; reduce j over lanes -> column.
    h2_col = jnp.sum(adj * (h1_row * w2g), axis=1, keepdims=True) + b2g   # (N, 1)
    h2_col = jnp.maximum(h2_col, 0.0)

    # squeeze() fused into MLP layer 1: contract axis 0 of h2_col with axis 0
    # of W1 (avoids an explicit transpose). bf16 x bf16 MXU, f32 accumulate.
    v = lax.dot_general(h2_col.astype(jnp.bfloat16), w1_ref[...],
                        dimension_numbers=(((0,), (0,)), ((), ())),
                        preferred_element_type=jnp.float32)               # (1, 512)
    v = jnp.maximum(v + b1_ref[...], 0.0)

    v = jnp.dot(v.astype(jnp.bfloat16), w2_ref[...],
                preferred_element_type=jnp.float32) + b2_ref[...]
    v = jnp.maximum(v, 0.0)                                               # (1, 512)

    v = jnp.dot(v.astype(jnp.bfloat16), w3_ref[...],
                preferred_element_type=jnp.float32) + b3_ref[...]
    v = jnp.maximum(v, 0.0)                                               # (1, 256)

    out = jnp.dot(v.astype(jnp.bfloat16), w4_ref[...],
                  preferred_element_type=jnp.float32) + b4_ref[...]
    o_ref[...] = out                                                      # (1, N)


def gcn_forward(x, adj, params):
    N, _F = x.shape
    (w1g, b1g, w2g, b2g, W1, B1, W2, B2, W3, B3, W4, B4) = params

    # Pack GC scalars for SMEM; pre-transpose adj outside the kernel (free,
    # lets both graph-conv layers stay on the VPU/XLU with no in-kernel
    # transpose).
    gc_scalars = jnp.stack([w1g, b1g, w2g, b2g]).astype(jnp.float32)      # (4,)
    adj = adj.astype(jnp.float32)
    adjT = adj.T

    operands = (gc_scalars, x.astype(jnp.float32), adj, adjT,
                W1.astype(jnp.bfloat16), B1,
                W2.astype(jnp.bfloat16), B2,
                W3.astype(jnp.bfloat16), B3,
                W4.astype(jnp.bfloat16), B4)

    smem = pl.BlockSpec(memory_space=pltpu.MemorySpace.SMEM)
    vmem = pl.BlockSpec(memory_space=pltpu.MemorySpace.VMEM)
    in_specs = [smem] + [vmem] * (len(operands) - 1)

    out = pl.pallas_call(
        gcn_kernel,
        out_shape=jax.ShapeDtypeStruct((1, N), jnp.float32),
        in_specs=in_specs,
        out_specs=vmem,
    )(*operands)
    return out.reshape(N)            # matches PyTorch's (nclass,) output


def gcn_reference(x, adj, params):
    """Pure-JAX reference with the same bf16 weight policy (sanity check)."""
    (w1g, b1g, w2g, b2g, W1, B1, W2, B2, W3, B3, W4, B4) = params
    s = jnp.sum(x, axis=1, keepdims=True)                                 # (N, 1)
    h = jnp.maximum(adj @ (s * w1g) + b1g, 0.0)
    h = jnp.maximum(adj @ (h * w2g) + b2g, 0.0)
    v = h.reshape(1, -1)                                                  # squeeze

    def lin(v, W, B):
        return jnp.dot(v.astype(jnp.bfloat16), W.astype(jnp.bfloat16),
                       preferred_element_type=jnp.float32) + B

    v = jnp.maximum(lin(v, W1, B1), 0.0)
    v = jnp.maximum(lin(v, W2, B2), 0.0)
    v = jnp.maximum(lin(v, W3, B3), 0.0)
    v = lin(v, W4, B4)
    return v.reshape(-1)


def init_params(key, nclass):
    """Deterministic parameter init mirroring the module's shapes."""
    ks = jax.random.split(key, 12)

    # GraphConvolution(1, 1): stdv = 1/sqrt(out_features) = 1.0
    stdv = 1.0
    w1g = jax.random.uniform(ks[0], (), jnp.float32, -stdv, stdv)
    b1g = jax.random.uniform(ks[1], (), jnp.float32, -stdv, stdv)
    w2g = jax.random.uniform(ks[2], (), jnp.float32, -stdv, stdv)
    b2g = jax.random.uniform(ks[3], (), jnp.float32, -stdv, stdv)

    def linear(kw, kb, fan_in, fan_out):
        bound = 1.0 / math.sqrt(fan_in)
        W = jax.random.uniform(kw, (fan_in, fan_out), jnp.float32, -bound, bound)
        b = jax.random.uniform(kb, (1, fan_out), jnp.float32, -bound, bound)
        return W, b

    W1, B1 = linear(ks[4], ks[5], nclass, 512)
    W2, B2 = linear(ks[6], ks[7], 512, 512)
    W3, B3 = linear(ks[8], ks[9], 512, 256)
    W4, B4 = linear(ks[10], ks[11], 256, nclass)

    return (w1g, b1g, w2g, b2g, W1, B1, W2, B2, W3, B3, W4, B4)


if __name__ == "__main__":
    N = 8      # number of graph nodes == nclass (MLP input dim = nclass)
    F_IN = 4   # per-node input features (summed away in forward)

    key = jax.random.PRNGKey(0)
    kx, ka, kp = jax.random.split(key, 3)

    x = jax.random.normal(kx, (N, F_IN), dtype=jnp.float32)
    adj_raw = jax.random.uniform(ka, (N, N), dtype=jnp.float32)
    adj = adj_raw / jnp.sum(adj_raw, axis=1, keepdims=True)   # row-normalized dense adjacency

    params = init_params(kp, nclass=N)

    out = gcn_forward(x, adj, params)
    jax.block_until_ready(out)
    assert out.shape == (N,) and out.dtype == jnp.float32
    assert bool(jnp.all(jnp.isfinite(out)))

    ref = gcn_reference(x, adj, params)
    max_err = float(jnp.max(jnp.abs(out - ref)))
    assert max_err < 5e-2, f"kernel/reference mismatch: max abs err {max_err}"

    print("KERNEL_OK")
</pallas_src>

<mosaic_0001>
module attributes {stable_mosaic.version = 11 : i64} {
  func.func @gcn_kernel(%arg0: memref<4xf32, #tpu.memory_space<smem>>, %arg1: memref<8x4xf32, #tpu.memory_space<vmem>>, %arg2: memref<8x8xf32, #tpu.memory_space<vmem>>, %arg3: memref<8x8xf32, #tpu.memory_space<vmem>>, %arg4: memref<8x512xbf16, #tpu.memory_space<vmem>>, %arg5: memref<1x512xf32, #tpu.memory_space<vmem>>, %arg6: memref<512x512xbf16, #tpu.memory_space<vmem>>, %arg7: memref<1x512xf32, #tpu.memory_space<vmem>>, %arg8: memref<512x256xbf16, #tpu.memory_space<vmem>>, %arg9: memref<1x256xf32, #tpu.memory_space<vmem>>, %arg10: memref<256x8xbf16, #tpu.memory_space<vmem>>, %arg11: memref<1x8xf32, #tpu.memory_space<vmem>>, %arg12: memref<1x8xf32, #tpu.memory_space<vmem>>) attributes {dimension_semantics = [], scalar_prefetch = 0 : i64, scratch_operands = 0 : i64, tpu.core_type = #tpu.core_type<tc>} {
    %c0 = arith.constant 0 : index
    %0 = memref.load %arg0[%c0] : memref<4xf32, #tpu.memory_space<smem>>
    %c1 = arith.constant 1 : index
    %1 = memref.load %arg0[%c1] : memref<4xf32, #tpu.memory_space<smem>>
    %c2 = arith.constant 2 : index
    %2 = memref.load %arg0[%c2] : memref<4xf32, #tpu.memory_space<smem>>
    %c3 = arith.constant 3 : index
    %3 = memref.load %arg0[%c3] : memref<4xf32, #tpu.memory_space<smem>>
    %c0_0 = arith.constant 0 : index
    %c0_1 = arith.constant 0 : index
    %4 = vector.load %arg1[%c0_0, %c0_1] : memref<8x4xf32, #tpu.memory_space<vmem>>, vector<8x4xf32>
    %c0_2 = arith.constant 0 : index
    %c0_3 = arith.constant 0 : index
    %5 = vector.load %arg2[%c0_2, %c0_3] : memref<8x8xf32, #tpu.memory_space<vmem>>, vector<8x8xf32>
    %c0_4 = arith.constant 0 : index
    %c0_5 = arith.constant 0 : index
    %6 = vector.load %arg3[%c0_4, %c0_5] : memref<8x8xf32, #tpu.memory_space<vmem>>, vector<8x8xf32>
    %cst = arith.constant dense<0.000000e+00> : vector<8xf32>
    %7 = vector.multi_reduction <add>, %4, %cst [1] : vector<8x4xf32> to vector<8xf32>
    %8 = vector.shape_cast %7 : vector<8xf32> to vector<8x1xf32>
    %9 = vector.broadcast %0 : f32 to vector<8x1xf32>
    %10 = arith.mulf %8, %9 : vector<8x1xf32>
    %11 = vector.broadcast %10 : vector<8x1xf32> to vector<8x8xf32>
    %12 = arith.mulf %6, %11 : vector<8x8xf32>
    %cst_6 = arith.constant dense<0.000000e+00> : vector<8xf32>
    %13 = vector.multi_reduction <add>, %12, %cst_6 [0] : vector<8x8xf32> to vector<8xf32>
    %14 = vector.shape_cast %13 : vector<8xf32> to vector<1x8xf32>
    %15 = vector.broadcast %1 : f32 to vector<1x8xf32>
    %16 = arith.addf %14, %15 : vector<1x8xf32>
    %cst_7 = arith.constant 0.000000e+00 : f32
    %17 = vector.broadcast %cst_7 : f32 to vector<1x8xf32>
    %18 = arith.maximumf %16, %17 : vector<1x8xf32>
    %19 = vector.broadcast %2 : f32 to vector<1x8xf32>
    %20 = arith.mulf %18, %19 : vector<1x8xf32>
    %21 = vector.broadcast %20 : vector<1x8xf32> to vector<8x8xf32>
    %22 = arith.mulf %5, %21 : vector<8x8xf32>
    %cst_8 = arith.constant dense<0.000000e+00> : vector<8xf32>
    %23 = vector.multi_reduction <add>, %22, %cst_8 [1] : vector<8x8xf32> to vector<8xf32>
    %24 = vector.shape_cast %23 : vector<8xf32> to vector<8x1xf32>
    %25 = vector.broadcast %3 : f32 to vector<8x1xf32>
    %26 = arith.addf %24, %25 : vector<8x1xf32>
    %cst_9 = arith.constant 0.000000e+00 : f32
    %27 = vector.broadcast %cst_9 : f32 to vector<8x1xf32>
    %28 = arith.maximumf %26, %27 : vector<8x1xf32>
    %29 = arith.truncf %28 : vector<8x1xf32> to vector<8x1xbf16>
    %c0_10 = arith.constant 0 : index
    %c0_11 = arith.constant 0 : index
    %30 = vector.load %arg4[%c0_10, %c0_11] : memref<8x512xbf16, #tpu.memory_space<vmem>>, vector<8x512xbf16>
    %cst_12 = arith.constant dense<0.000000e+00> : vector<1x512xf32>
    %31 = tpu.matmul %29, %30, %cst_12 {dimension_numbers = #tpu.dot_dimension_numbers<[0], [0], [1], [1], [0, 1, 1, 1], [], []>} : vector<8x1xbf16>, vector<8x512xbf16>, vector<1x512xf32> -> vector<1x512xf32>
    %c0_13 = arith.constant 0 : index
    %c0_14 = arith.constant 0 : index
    %32 = vector.load %arg5[%c0_13, %c0_14] : memref<1x512xf32, #tpu.memory_space<vmem>>, vector<1x512xf32>
    %33 = arith.addf %31, %32 : vector<1x512xf32>
    %cst_15 = arith.constant 0.000000e+00 : f32
    %34 = vector.broadcast %cst_15 : f32 to vector<1x512xf32>
    %35 = arith.maximumf %33, %34 : vector<1x512xf32>
    %36 = arith.truncf %35 : vector<1x512xf32> to vector<1x512xbf16>
    %c0_16 = arith.constant 0 : index
    %c0_17 = arith.constant 0 : index
    %37 = vector.load %arg6[%c0_16, %c0_17] : memref<512x512xbf16, #tpu.memory_space<vmem>>, vector<512x512xbf16>
    %cst_18 = arith.constant dense<0.000000e+00> : vector<1x512xf32>
    %38 = tpu.matmul %36, %37, %cst_18 {dimension_numbers = #tpu.dot_dimension_numbers<[1], [0], [0], [1], [0, 0, 1, 1], [], []>} : vector<1x512xbf16>, vector<512x512xbf16>, vector<1x512xf32> -> vector<1x512xf32>
    %c0_19 = arith.constant 0 : index
    %c0_20 = arith.constant 0 : index
    %39 = vector.load %arg7[%c0_19, %c0_20] : memref<1x512xf32, #tpu.memory_space<vmem>>, vector<1x512xf32>
    %40 = arith.addf %38, %39 : vector<1x512xf32>
    %cst_21 = arith.constant 0.000000e+00 : f32
    %41 = vector.broadcast %cst_21 : f32 to vector<1x512xf32>
    %42 = arith.maximumf %40, %41 : vector<1x512xf32>
    %43 = arith.truncf %42 : vector<1x512xf32> to vector<1x512xbf16>
    %c0_22 = arith.constant 0 : index
    %c0_23 = arith.constant 0 : index
    %44 = vector.load %arg8[%c0_22, %c0_23] : memref<512x256xbf16, #tpu.memory_space<vmem>>, vector<512x256xbf16>
    %cst_24 = arith.constant dense<0.000000e+00> : vector<1x256xf32>
    %45 = tpu.matmul %43, %44, %cst_24 {dimension_numbers = #tpu.dot_dimension_numbers<[1], [0], [0], [1], [0, 0, 1, 1], [], []>} : vector<1x512xbf16>, vector<512x256xbf16>, vector<1x256xf32> -> vector<1x256xf32>
    %c0_25 = arith.constant 0 : index
    %c0_26 = arith.constant 0 : index
    %46 = vector.load %arg9[%c0_25, %c0_26] : memref<1x256xf32, #tpu.memory_space<vmem>>, vector<1x256xf32>
    %47 = arith.addf %45, %46 : vector<1x256xf32>
    %cst_27 = arith.constant 0.000000e+00 : f32
    %48 = vector.broadcast %cst_27 : f32 to vector<1x256xf32>
    %49 = arith.maximumf %47, %48 : vector<1x256xf32>
    %50 = arith.truncf %49 : vector<1x256xf32> to vector<1x256xbf16>
    %c0_28 = arith.constant 0 : index
    %c0_29 = arith.constant 0 : index
    %51 = vector.load %arg10[%c0_28, %c0_29] : memref<256x8xbf16, #tpu.memory_space<vmem>>, vector<256x8xbf16>
    %cst_30 = arith.constant dense<0.000000e+00> : vector<1x8xf32>
    %52 = tpu.matmul %50, %51, %cst_30 {dimension_numbers = #tpu.dot_dimension_numbers<[1], [0], [0], [1], [0, 0, 1, 1], [], []>} : vector<1x256xbf16>, vector<256x8xbf16>, vector<1x8xf32> -> vector<1x8xf32>
    %c0_31 = arith.constant 0 : index
    %c0_32 = arith.constant 0 : index
    %53 = vector.load %arg11[%c0_31, %c0_32] : memref<1x8xf32, #tpu.memory_space<vmem>>, vector<1x8xf32>
    %54 = arith.addf %52, %53 : vector<1x8xf32>
    %c0_33 = arith.constant 0 : index
    %c0_34 = arith.constant 0 : index
    %55 = vector.load %arg12[%c0_33, %c0_34] : memref<1x8xf32, #tpu.memory_space<vmem>>, vector<1x8xf32>
    tpu.vector_store %arg12[%c0_33, %c0_34], %54 {strides = array<i32>} : memref<1x8xf32, #tpu.memory_space<vmem>>, vector<1x8xf32>,
    return
  }
}

</mosaic_0001>

<llo_original>
// kernel: tpu_custom_call.1
$region0: #{tpu_custom_call.1}
  #allocation0 [shape = 'u32[]', space=smem, size = 0x4, offset = 0x4, fixed_abs, tag = 'smem constant byte address 0x4 - core index']
  #allocation1 [shape = 'u32[144,128]{1,0:T(1,128)}', space=vmem, size = 0x12000, scoped, tag = 'internal scratch']
  %s0 = inlined_call_operand.vmem [shape: f32[4], index: 0, kind: input, shape index: {}]
  %s1 = inlined_call_operand.vmem [shape: f32[8,4], index: 1, kind: input, shape index: {}]
  %s2 = inlined_call_operand.vmem [shape: f32[8,8], index: 2, kind: input, shape index: {}]
  %s3 = inlined_call_operand.vmem [shape: f32[8,8], index: 3, kind: input, shape index: {}]
  %s4 = inlined_call_operand.vmem [shape: bf16[8,512], index: 4, kind: input, shape index: {}]
  %s5 = inlined_call_operand.vmem [shape: f32[1,512], index: 5, kind: input, shape index: {}]
  %s6 = inlined_call_operand.hbm [shape: bf16[512,512], index: 6, kind: input, shape index: {}]
  %s7 = inlined_call_operand.vmem [shape: f32[1,512], index: 7, kind: input, shape index: {}]
  %s8 = inlined_call_operand.hbm [shape: bf16[512,256], index: 8, kind: input, shape index: {}]
  %s9 = inlined_call_operand.vmem [shape: f32[1,256], index: 9, kind: input, shape index: {}]
  %s10 = inlined_call_operand.vmem [shape: bf16[256,8], index: 10, kind: input, shape index: {}]
  %s11 = inlined_call_operand.vmem [shape: f32[1,8], index: 11, kind: input, shape index: {}]
  %s12 = inlined_call_operand.hbm [shape: f32[1,8], index: 12, kind: output, shape index: {}]
  %s13 = sld [smem:[#allocation0]]
  $region70: #{tpu_custom_call.1} parent=0
    _
  %s15 = ssub.s32 1, %s13
  %s16 = scalar_select 0, %s15, %s13
  $region1: #{tpu_custom_call.1} parent=0
    #allocation2 [shape = 'u8[512]{0}', space=smem, size = 0x200, scoped, tag = 'input window, operand 0, single buffered']
    #allocation3 [shape = 's32[1]{0}', space=sflag, size = 0x4, scoped, tag = 'scoped memory for tpu_custom_call.1']
    #allocation4 [shape = 's32[1]{0}', space=sflag, size = 0x4, scoped, tag = 'scoped memory for tpu_custom_call.1']
    #allocation5 [shape = 's32[1]{0}', space=sflag, size = 0x4, scoped, tag = 'scoped memory for tpu_custom_call.1']
    #allocation6 [shape = 'u8[524288]{0}', space=vmem, size = 0x80000, scoped, tag = 'input window, operand 6, single buffered']
    #allocation7 [shape = 'u8[262144]{0}', space=vmem, size = 0x40000, scoped, tag = 'input window, operand 8, single buffered']
    #allocation8 [shape = 's32[1]{0}', space=sflag, size = 0x4, scoped, tag = 'scoped memory for tpu_custom_call.1']
    #allocation9 [shape = 'u8[512]{0}', space=vmem, size = 0x400, scoped, tag = 'output window, operand 0, single buffered']
    %17 = vsyncpa [#allocation5], 0
    %18 = vsyncpa [#allocation3], 0
    %19 = vsyncpa [#allocation8], 0
    %20 = vsyncpa [#allocation4], 0
    // Predicated region
    $region2: #{tpu_custom_call.1} parent=1 // pred_check
      _
    $region3: #{tpu_custom_call.1} parent=1 // pred_check_branch
      %22 = sbr.rel (0) target = $region5
    $region4: #{tpu_custom_call.1} parent=1 // pred_region
      %s24 = ssub.s32 16, 16
      %25 = vsyncadd [#allocation5], %s24
      %s27 = sshll.u32 %s0, 4
      %s28 = int_to_ptr.vmem [resolvable:$true] %s27
      %30 = dma.vmem_to_smem %s28, 16, [#allocation2], [#allocation5]
    $region5: #{tpu_custom_call.1} parent=1 // pred_fallthru
      _
    // Predicated region
    $region6: #{tpu_custom_call.1} parent=1 // pred_check
      _
    $region7: #{tpu_custom_call.1} parent=1 // pred_check_branch
      %32 = sbr.rel (0) target = $region9
    $region8: #{tpu_custom_call.1} parent=1 // pred_region
      _
    $region9: #{tpu_custom_call.1} parent=1 // pred_fallthru
      _
    // Predicated region
    $region10: #{tpu_custom_call.1} parent=1 // pred_check
      _
    $region11: #{tpu_custom_call.1} parent=1 // pred_check_branch
      %34 = sbr.rel (0) target = $region13
    $region12: #{tpu_custom_call.1} parent=1 // pred_region
      _
    $region13: #{tpu_custom_call.1} parent=1 // pred_fallthru
      _
    // Predicated region
    $region14: #{tpu_custom_call.1} parent=1 // pred_check
      _
    $region15: #{tpu_custom_call.1} parent=1 // pred_check_branch
      %36 = sbr.rel (0) target = $region17
    $region16: #{tpu_custom_call.1} parent=1 // pred_region
      _
    $region17: #{tpu_custom_call.1} parent=1 // pred_fallthru
      _
    // Predicated region
    $region18: #{tpu_custom_call.1} parent=1 // pred_check
      _
    $region19: #{tpu_custom_call.1} parent=1 // pred_check_branch
      %38 = sbr.rel (0) target = $region21
    $region20: #{tpu_custom_call.1} parent=1 // pred_region
      _
    $region21: #{tpu_custom_call.1} parent=1 // pred_fallthru
      _
    // Predicated region
    $region22: #{tpu_custom_call.1} parent=1 // pred_check
      _
    $region23: #{tpu_custom_call.1} parent=1 // pred_check_branch
      %40 = sbr.rel (0) target = $region25
    $region24: #{tpu_custom_call.1} parent=1 // pred_region
      _
    $region25: #{tpu_custom_call.1} parent=1 // pred_fallthru
      _
    // Predicated region
    $region26: #{tpu_custom_call.1} parent=1 // pred_check
      _
    $region27: #{tpu_custom_call.1} parent=1 // pred_check_branch
      %42 = sbr.rel (0) target = $region29
    $region28: #{tpu_custom_call.1} parent=1 // pred_region
      %s44 = ssub.s32 16384, 16384
      %45 = vsyncadd [#allocation3], %s44
      %s46 = sshll.u32 [#allocation6], 4
      %s47 = int_to_ptr.vmem [resolvable:$true] %s46
      %52 = dma.hbm_to_vmem [thread:$0]  %s6, 16384, %s47, [#allocation3], 256, 256, 16
    $region29: #{tpu_custom_call.1} parent=1 // pred_fallthru
      _
    // Predicated region
    $region30: #{tpu_custom_call.1} parent=1 // pred_check
      _
    $region31: #{tpu_custom_call.1} parent=1 // pred_check_branch
      %54 = sbr.rel (0) target = $region33
    $region32: #{tpu_custom_call.1} parent=1 // pred_region
      _
    $region33: #{tpu_custom_call.1} parent=1 // pred_fallthru
      _
    // Predicated region
    $region34: #{tpu_custom_call.1} parent=1 // pred_check
      _
    $region35: #{tpu_custom_call.1} parent=1 // pred_check_branch
      %56 = sbr.rel (0) target = $region37
    $region36: #{tpu_custom_call.1} parent=1 // pred_region
      %s58 = ssub.s32 8192, 8192
      %59 = vsyncadd [#allocation8], %s58
      %s60 = sshll.u32 [#allocation7], 4
      %s61 = int_to_ptr.vmem [resolvable:$true] %s60
      %66 = dma.hbm_to_vmem [thread:$0]  %s8, 8192, %s61, [#allocation8], 128, 128, 8
    $region37: #{tpu_custom_call.1} parent=1 // pred_fallthru
      _
    // Predicated region
    $region38: #{tpu_custom_call.1} parent=1 // pred_check
      _
    $region39: #{tpu_custom_call.1} parent=1 // pred_check_branch
      %68 = sbr.rel (0) target = $region41
    $region40: #{tpu_custom_call.1} parent=1 // pred_region
      _
    $region41: #{tpu_custom_call.1} parent=1 // pred_fallthru
      _
    // Predicated region
    $region42: #{tpu_custom_call.1} parent=1 // pred_check
      _
    $region43: #{tpu_custom_call.1} parent=1 // pred_check_branch
      %70 = sbr.rel (0) target = $region45
    $region44: #{tpu_custom_call.1} parent=1 // pred_region
      _
    $region45: #{tpu_custom_call.1} parent=1 // pred_fallthru
      _
    // Predicated region
    $region46: #{tpu_custom_call.1} parent=1 // pred_check
      _
    $region47: #{tpu_custom_call.1} parent=1 // pred_check_branch
      %72 = sbr.rel (0) target = $region49
    $region48: #{tpu_custom_call.1} parent=1 // pred_region
      _
    $region49: #{tpu_custom_call.1} parent=1 // pred_fallthru
      _
    // Predicated region
    $region50: #{tpu_custom_call.1} parent=1 // pred_check
      _
    $region51: #{tpu_custom_call.1} parent=1 // pred_check_branch
      %74 = sbr.rel (0) target = $region53
    $region52: #{tpu_custom_call.1} parent=1 // pred_region
      %75 = dma.done [#allocation5], 16
    $region53: #{tpu_custom_call.1} parent=1 // pred_fallthru
      _
    // Predicated region
    $region54: #{tpu_custom_call.1} parent=1 // pred_check
      _
    $region55: #{tpu_custom_call.1} parent=1 // pred_check_branch
      %77 = sbr.rel (0) target = $region57
    $region56: #{tpu_custom_call.1} parent=1 // pred_region
      %78 = dma.done [#allocation3], 16384
    $region57: #{tpu_custom_call.1} parent=1 // pred_fallthru
      _
    // Predicated region
    $region58: #{tpu_custom_call.1} parent=1 // pred_check
      _
    $region59: #{tpu_custom_call.1} parent=1 // pred_check_branch
      %80 = sbr.rel (0) target = $region61
    $region60: #{tpu_custom_call.1} parent=1 // pred_region
      %81 = dma.done [#allocation8], 8192
    $region61: #{tpu_custom_call.1} parent=1 // pred_fallthru
      _
    %82 = sfence
    %s84 = sld [smem:[#allocation2]]
    %s85 = sld [smem:[#allocation2 + $0x1]]
    %s86 = sld [smem:[#allocation2 + $0x2]]
    %s87 = sld [smem:[#allocation2 + $0x3]]
    %v88 = vld [vmem:[%s1] sm:$0xff]
    %v89 = vld [vmem:[%s2] sm:$0xff]
    %v90 = vld [vmem:[%s3] sm:$0xff]
    %vm91 = vcmask 31744
    %v92 = vsel %vm91, %v88, 0.0
    %93 = vadd.xlane.f32.xlu0 %v92
    %v94 = vpop.xlane.xlu0 %93
    %v95 = vstv %s84
    %v96 = vmul.f32 %v94, %v95
    %v97 = vmul.f32 %v90, %v96
    %vm98 = vcmask 64512
    %v99 = vsel %vm98, %v97, 0.0
    %v100 = vrot.slane %v99, 4
    %v101 = vadd.f32 %v99, %v100
    %v102 = vrot.slane %v101, 2
    %v103 = vadd.f32 %v101, %v102
    %v104 = vrot.slane %v103, 1
    %v105 = vadd.f32 %v103, %v104
    %v106 = vstv %s85
    %v107 = vadd.f32 %v105, %v106
    %v108 = vmax.f32 %v107, 0.0
    %v109 = vstv %s86
    %v110 = vmul.f32 %v108, %v109
    %v111 = vmul.f32 %v89, %v110
    %v112 = vsel %vm98, %v111, 0.0
    %113 = vadd.xlane.f32.xlu0 %v112
    %v114 = vpop.xlane.xlu0 %113
    %v115 = vstv %s87
    %v116 = vadd.f32 %v114, %v115
    %v117 = vmax.f32 %v116, 0.0
    %v118 = vpack.c.bf16 %v117, %v117
    %v119 = vld [vmem:[%s4] sm:$0xff]
    %v120 = vld [vmem:[%s4 + $0x8] sm:$0xff]
    %v121 = vld [vmem:[%s5] sm:$0xf]
    %122 = vxpose.xlu0.c.b16.start [1/8] %v118, 128
    %123 = vxpose.xlu0.c.b16.cont [2/8] 0, 128
    %124 = vxpose.xlu0.c.b16.cont [3/8] 0, 128
    %125 = vxpose.xlu0.c.b16.cont [4/8] 0, 128
    %126 = vxpose.xlu0.c.b16.cont [5/8] 0, 128
    %127 = vxpose.xlu0.c.b16.cont [6/8] 0, 128
    %128 = vxpose.xlu0.c.b16.cont [7/8] 0, 128
    %129 = vxpose.xlu0.c.b16.end [8/8] 0, 128
    %v130 = vpop.trf.xlu0
    %v131 = vpop.trf.xlu0
    %v132 = vpop.trf.xlu0
    %v133 = vpop.trf.xlu0
    %v134 = vpop.trf.xlu0
    %v135 = vpop.trf.xlu0
    %v136 = vpop.trf.xlu0
    %v137 = vpop.trf.xlu0
    %v140 = vunpack.c.l.b16 %v119
    %v141 = vunpack.c.h.b16 %v119
    %v142 = vunpack.c.l.b16 %v120
    %v143 = vunpack.c.h.b16 %v120
    %v144 = vpack.c.b16 %v140, %v140
    %v145 = vpack.c.b16 %v141, %v141
    %v146 = vpack.c.b16 %v142, %v142
    %v147 = vpack.c.b16 %v143, %v143
    %v149 = vlaneseq
    %v150 = vshrl.u32 %v149, 7
    %v151 = vsub.s32 0, %v150
    %v152 = vrot.slane %v121, %v151
    %v153 = vlaneseq
    %v154 = vshrl.u32 %v153, 7
    %v155 = vsub.s32 1, %v154
    %v156 = vrot.slane %v121, %v155
    %v157 = vlaneseq
    %v158 = vshrl.u32 %v157, 7
    %v159 = vsub.s32 2, %v158
    %v160 = vrot.slane %v121, %v159
    %v161 = vlaneseq
    %v162 = vshrl.u32 %v161, 7
    %v163 = vsub.s32 3, %v162
    %v164 = vrot.slane %v121, %v163
    %v170 = vsel %vm98, %v130, 0
    %vm172 = vcmask 1043456
    %v174 = vsel %vm172, %v144, 0
    %v177 = vsel %vm172, %v145, 0
    %v180 = vsel %vm172, %v146, 0
    %v183 = vsel %vm172, %v147, 0
    %185 = vmatprep.subr.bf16.mxu0 0
    %186 = vmatpush1.bf16.msra.mxu0 0
    %187 = vmatprep.subr.bf16.mxu0 0
    %188 = vmatpush1.bf16.msra.mxu0 0
    %189 = vmatprep.subr.bf16.mxu0 0
    %190 = vmatpush1.bf16.msra.mxu0 0
    %191 = vmatprep.subr.bf16.mxu0 0
    %192 = vmatpush1.bf16.msra.mxu0 0
    %193 = vmatprep.subr.bf16.mxu0 0
    %194 = vmatpush1.bf16.msra.mxu0 0
    %195 = vmatprep.subr.bf16.mxu0 0
    %196 = vmatpush1.bf16.msra.mxu0 0
    %197 = vmatprep.subr.bf16.mxu0 0
    %198 = vmatpush1.bf16.msra.mxu0 0
    %199 = vmatprep.subr.bf16.mxu0 %v177
    %200 = vmatpush1.bf16.msra.mxu0 %v174
    %201 = vmatprep.subr.bf16.mxu0 0
    %202 = vmatpush2.bf16.msra.mxu0 0
    %203 = vmatprep.subr.bf16.mxu0 0
    %204 = vmatpush2.bf16.msra.mxu0 0
    %205 = vmatprep.subr.bf16.mxu0 0
    %206 = vmatpush2.bf16.msra.mxu0 0
    %207 = vmatprep.subr.bf16.mxu0 0
    %208 = vmatpush2.bf16.msra.mxu0 0
    %209 = vmatprep.subr.bf16.mxu0 0
    %210 = vmatpush2.bf16.msra.mxu0 0
    %211 = vmatprep.subr.bf16.mxu0 0
    %212 = vmatpush2.bf16.msra.mxu0 0
    %213 = vmatprep.subr.bf16.mxu0 0
    %214 = vmatpush2.bf16.msra.mxu0 0
    %215 = vmatprep.subr.bf16.mxu0 0
    %216 = vmatpush2.bf16.msra.mxu0 0
    %217 = vmatprep.mubr.bf16.mxu0 0
    %218 = vmatmul.mubr.bf16.gmra.mxu0 %v170
    %v219 = vpop.f32.mrf.mxu0
    %v220 = vadd.f32 %v152, %v219
    %v221 = vpop.f32.mrf.mxu0
    %v222 = vadd.f32 %v156, %v221
    %v223 = vpop.f32.mrf.mxu0
    %v224 = vpop.f32.mrf.mxu0
    %225 = vdwg.mxu0
    %226 = vmatprep.subr.bf16.mxu0 0
    %227 = vmatpush1.bf16.msra.mxu0 0
    %228 = vmatprep.subr.bf16.mxu0 0
    %229 = vmatpush1.bf16.msra.mxu0 0
    %230 = vmatprep.subr.bf16.mxu0 0
    %231 = vmatpush1.bf16.msra.mxu0 0
    %232 = vmatprep.subr.bf16.mxu0 0
    %233 = vmatpush1.bf16.msra.mxu0 0
    %234 = vmatprep.subr.bf16.mxu0 0
    %235 = vmatpush1.bf16.msra.mxu0 0
    %236 = vmatprep.subr.bf16.mxu0 0
    %237 = vmatpush1.bf16.msra.mxu0 0
    %238 = vmatprep.subr.bf16.mxu0 0
    %239 = vmatpush1.bf16.msra.mxu0 0
    %240 = vmatprep.subr.bf16.mxu0 %v183
    %241 = vmatpush1.bf16.msra.mxu0 %v180
    %242 = vmatprep.subr.bf16.mxu0 0
    %243 = vmatpush2.bf16.msra.mxu0 0
    %244 = vmatprep.subr.bf16.mxu0 0
    %245 = vmatpush2.bf16.msra.mxu0 0
    %246 = vmatprep.subr.bf16.mxu0 0
    %247 = vmatpush2.bf16.msra.mxu0 0
    %248 = vmatprep.subr.bf16.mxu0 0
    %249 = vmatpush2.bf16.msra.mxu0 0
    %250 = vmatprep.subr.bf16.mxu0 0
    %251 = vmatpush2.bf16.msra.mxu0 0
    %252 = vmatprep.subr.bf16.mxu0 0
    %253 = vmatpush2.bf16.msra.mxu0 0
    %254 = vmatprep.subr.bf16.mxu0 0
    %255 = vmatpush2.bf16.msra.mxu0 0
    %256 = vmatprep.subr.bf16.mxu0 0
    %257 = vmatpush2.bf16.msra.mxu0 0
    %258 = vmatprep.mubr.bf16.mxu0 0
    %259 = vmatmul.mubr.bf16.gmra.mxu0 %v170
    %v260 = vpop.f32.mrf.mxu0
    %v261 = vadd.f32 %v160, %v260
    %v262 = vpop.f32.mrf.mxu0
    %v263 = vadd.f32 %v164, %v262
    %v264 = vpop.f32.mrf.mxu0
    %v265 = vpop.f32.mrf.mxu0
    %266 = vdwg.mxu0
    %v267 = vmax.f32 %v220, 0.0
    %v268 = vmax.f32 %v222, 0.0
    %v269 = vmax.f32 %v261, 0.0
    %v270 = vmax.f32 %v263, 0.0
    %v271 = vpack.c.bf16 %v267, %v267
    %v272 = vpack.c.bf16 %v268, %v268
    %v273 = vpack.c.bf16 %v269, %v269
    %v274 = vpack.c.bf16 %v270, %v270
    %v275 = vld [vmem:[#allocation6] sm:$0xff]
    %v276 = vld [vmem:[#allocation6 + $0x8] sm:$0xff]
    %v277 = vld [vmem:[#allocation6 + $0x10] sm:$0xff]
    %v278 = vld [vmem:[#allocation6 + $0x18] sm:$0xff]
    %v279 = vld [vmem:[#allocation6 + $0x20] sm:$0xff]
    %v280 = vld [vmem:[#allocation6 + $0x28] sm:$0xff]
    %v281 = vld [vmem:[#allocation6 + $0x30] sm:$0xff]
    %v282 = vld [vmem:[#allocation6 + $0x38] sm:$0xff]
    %v283 = vld [vmem:[#allocation6 + $0x40] sm:$0xff]
    %v284 = vld [vmem:[#allocation6 + $0x48] sm:$0xff]
    %v285 = vld [vmem:[#allocation6 + $0x50] sm:$0xff]
    %v286 = vld [vmem:[#allocation6 + $0x58] sm:$0xff]
    %v287 = vld [vmem:[#allocation6 + $0x60] sm:$0xff]
    %v288 = vld [vmem:[#allocation6 + $0x68] sm:$0xff]
    %v289 = vld [vmem:[#allocation6 + $0x70] sm:$0xff]
    %v290 = vld [vmem:[#allocation6 + $0x78] sm:$0xff]
    %v291 = vld [vmem:[#allocation6 + $0x80] sm:$0xff]
    %v292 = vld [vmem:[#allocation6 + $0x88] sm:$0xff]
    %v293 = vld [vmem:[#allocation6 + $0x90] sm:$0xff]
    %v294 = vld [vmem:[#allocation6 + $0x98] sm:$0xff]
    %v295 = vld [vmem:[#allocation6 + $0xa0] sm:$0xff]
    %v296 = vld [vmem:[#allocation6 + $0xa8] sm:$0xff]
    %v297 = vld [vmem:[#allocation6 + $0xb0] sm:$0xff]
    %v298 = vld [vmem:[#allocation6 + $0xb8] sm:$0xff]
    %v299 = vld [vmem:[#allocation6 + $0xc0] sm:$0xff]
    %v300 = vld [vmem:[#allocation6 + $0xc8] sm:$0xff]
    %v301 = vld [vmem:[#allocation6 + $0xd0] sm:$0xff]
    %v302 = vld [vmem:[#allocation6 + $0xd8] sm:$0xff]
    %v303 = vld [vmem:[#allocation6 + $0xe0] sm:$0xff]
    %v304 = vld [vmem:[#allocation6 + $0xe8] sm:$0xff]
    %v305 = vld [vmem:[#allocation6 + $0xf0] sm:$0xff]
    %v306 = vld [vmem:[#allocation6 + $0xf8] sm:$0xff]
    %v307 = vld [vmem:[#allocation6 + $0x100] sm:$0xff]
    %v308 = vld [vmem:[#allocation6 + $0x108] sm:$0xff]
    %v309 = vld [vmem:[#allocation6 + $0x110] sm:$0xff]
    %v310 = vld [vmem:[#allocation6 + $0x118] sm:$0xff]
    %v311 = vld [vmem:[#allocation6 + $0x120] sm:$0xff]
    %v312 = vld [vmem:[#allocation6 + $0x128] sm:$0xff]
    %v313 = vld [vmem:[#allocation6 + $0x130] sm:$0xff]
    %v314 = vld [vmem:[#allocation6 + $0x138] sm:$0xff]
    %v315 = vld [vmem:[#allocation6 + $0x140] sm:$0xff]
    %v316 = vld [vmem:[#allocation6 + $0x148] sm:$0xff]
    %v317 = vld [vmem:[#allocation6 + $0x150] sm:$0xff]
    %v318 = vld [vmem:[#allocation6 + $0x158] sm:$0xff]
    %v319 = vld [vmem:[#allocation6 + $0x160] sm:$0xff]
    %v320 = vld [vmem:[#allocation6 + $0x168] sm:$0xff]
    %v321 = vld [vmem:[#allocation6 + $0x170] sm:$0xff]
    %v322 = vld [vmem:[#allocation6 + $0x178] sm:$0xff]
    %v323 = vld [vmem:[#allocation6 + $0x180] sm:$0xff]
    %v324 = vld [vmem:[#allocation6 + $0x188] sm:$0xff]
    %v325 = vld [vmem:[#allocation6 + $0x190] sm:$0xff]
    %v326 = vld [vmem:[#allocation6 + $0x198] sm:$0xff]
    %v327 = vld [vmem:[#allocation6 + $0x1a0] sm:$0xff]
    %v328 = vld [vmem:[#allocation6 + $0x1a8] sm:$0xff]
    %v329 = vld [vmem:[#allocation6 + $0x1b0] sm:$0xff]
    %v330 = vld [vmem:[#allocation6 + $0x1b8] sm:$0xff]
    %v331 = vld [vmem:[#allocation6 + $0x1c0] sm:$0xff]
    %v332 = vld [vmem:[#allocation6 + $0x1c8] sm:$0xff]
    %v333 = vld [vmem:[#allocation6 + $0x1d0] sm:$0xff]
    %v334 = vld [vmem:[#allocation6 + $0x1d8] sm:$0xff]
    %v335 = vld [vmem:[#allocation6 + $0x1e0] sm:$0xff]
    %v336 = vld [vmem:[#allocation6 + $0x1e8] sm:$0xff]
    %v337 = vld [vmem:[#allocation6 + $0x1f0] sm:$0xff]
    %v338 = vld [vmem:[#allocation6 + $0x1f8] sm:$0xff]
    %v339 = vld [vmem:[#allocation6 + $0x200] sm:$0xff]
    %v340 = vld [vmem:[#allocation6 + $0x208] sm:$0xff]
    %v341 = vld [vmem:[#allocation6 + $0x210] sm:$0xff]
    %v342 = vld [vmem:[#allocation6 + $0x218] sm:$0xff]
    %v343 = vld [vmem:[#allocation6 + $0x220] sm:$0xff]
    %v344 = vld [vmem:[#allocation6 + $0x228] sm:$0xff]
    %v345 = vld [vmem:[#allocation6 + $0x230] sm:$0xff]
    %v346 = vld [vmem:[#allocation6 + $0x238] sm:$0xff]
    %v347 = vld [vmem:[#allocation6 + $0x240] sm:$0xff]
    %v348 = vld [vmem:[#allocation6 + $0x248] sm:$0xff]
    %v349 = vld [vmem:[#allocation6 + $0x250] sm:$0xff]
    %v350 = vld [vmem:[#allocation6 + $0x258] sm:$0xff]
    %v351 = vld [vmem:[#allocation6 + $0x260] sm:$0xff]
    %v352 = vld [vmem:[#allocation6 + $0x268] sm:$0xff]
    %v353 = vld [vmem:[#allocation6 + $0x270] sm:$0xff]
    %v354 = vld [vmem:[#allocation6 + $0x278] sm:$0xff]
    %v355 = vld [vmem:[#allocation6 + $0x280] sm:$0xff]
    %v356 = vld [vmem:[#allocation6 + $0x288] sm:$0xff]
    %v357 = vld [vmem:[#allocation6 + $0x290] sm:$0xff]
    %v358 = vld [vmem:[#allocation6 + $0x298] sm:$0xff]
    %v359 = vld [vmem:[#allocation6 + $0x2a0] sm:$0xff]
    %v360 = vld [vmem:[#allocation6 + $0x2a8] sm:$0xff]
    %v361 = vld [vmem:[#allocation6 + $0x2b0] sm:$0xff]
    %v362 = vld [vmem:[#allocation6 + $0x2b8] sm:$0xff]
    %v363 = vld [vmem:[#allocation6 + $0x2c0] sm:$0xff]
    %v364 = vld [vmem:[#allocation6 + $0x2c8] sm:$0xff]
    %v365 = vld [vmem:[#allocation6 + $0x2d0] sm:$0xff]
    %v366 = vld [vmem:[#allocation6 + $0x2d8] sm:$0xff]
    %v367 = vld [vmem:[#allocation6 + $0x2e0] sm:$0xff]
    %v368 = vld [vmem:[#allocation6 + $0x2e8] sm:$0xff]
    %v369 = vld [vmem:[#allocation6 + $0x2f0] sm:$0xff]
    %v370 = vld [vmem:[#allocation6 + $0x2f8] sm:$0xff]
    %v371 = vld [vmem:[#allocation6 + $0x300] sm:$0xff]
    %v372 = vld [vmem:[#allocation6 + $0x308] sm:$0xff]
    %v373 = vld [vmem:[#allocation6 + $0x310] sm:$0xff]
    %v374 = vld [vmem:[#allocation6 + $0x318] sm:$0xff]
    %v375 = vld [vmem:[#allocation6 + $0x320] sm:$0xff]
    %v376 = vld [vmem:[#allocation6 + $0x328] sm:$0xff]
    %v377 = vld [vmem:[#allocation6 + $0x330] sm:$0xff]
    %v378 = vld [vmem:[#allocation6 + $0x338] sm:$0xff]
    %v379 = vld [vmem:[#allocation6 + $0x340] sm:$0xff]
    %v380 = vld [vmem:[#allocation6 + $0x348] sm:$0xff]
    %v381 = vld [vmem:[#allocation6 + $0x350] sm:$0xff]
    %v382 = vld [vmem:[#allocation6 + $0x358] sm:$0xff]
    %v383 = vld [vmem:[#allocation6 + $0x360] sm:$0xff]
    %v384 = vld [vmem:[#allocation6 + $0x368] sm:$0xff]
    %v385 = vld [vmem:[#allocation6 + $0x370] sm:$0xff]
    %v386 = vld [vmem:[#allocation6 + $0x378] sm:$0xff]
    %v387 = vld [vmem:[#allocation6 + $0x380] sm:$0xff]
    %v388 = vld [vmem:[#allocation6 + $0x388] sm:$0xff]
    %v389 = vld [vmem:[#allocation6 + $0x390] sm:$0xff]
    %v390 = vld [vmem:[#allocation6 + $0x398] sm:$0xff]
    %v391 = vld [vmem:[#allocation6 + $0x3a0] sm:$0xff]
    %v392 = vld [vmem:[#allocation6 + $0x3a8] sm:$0xff]
    %v393 = vld [vmem:[#allocation6 + $0x3b0] sm:$0xff]
    %v394 = vld [vmem:[#allocation6 + $0x3b8] sm:$0xff]
    %v395 = vld [vmem:[#allocation6 + $0x3c0] sm:$0xff]
    %v396 = vld [vmem:[#allocation6 + $0x3c8] sm:$0xff]
    %v397 = vld [vmem:[#allocation6 + $0x3d0] sm:$0xff]
    %v398 = vld [vmem:[#allocation6 + $0x3d8] sm:$0xff]
    %v399 = vld [vmem:[#allocation6 + $0x3e0] sm:$0xff]
    %v400 = vld [vmem:[#allocation6 + $0x3e8] sm:$0xff]
    %v401 = vld [vmem:[#allocation6 + $0x3f0] sm:$0xff]
    %v402 = vld [vmem:[#allocation6 + $0x3f8] sm:$0xff]
    %v403 = vld [vmem:[%s7] sm:$0xf]
    %v532 = vunpack.c.l.b16 %v275
    %v533 = vunpack.c.h.b16 %v275
    %v534 = vunpack.c.l.b16 %v276
    %v535 = vunpack.c.h.b16 %v276
    %v536 = vunpack.c.l.b16 %v277
    %v537 = vunpack.c.h.b16 %v277
    %v538 = vunpack.c.l.b16 %v278
    %v539 = vunpack.c.h.b16 %v278
    %v540 = vunpack.c.l.b16 %v279
    %v541 = vunpack.c.h.b16 %v279
    %v542 = vunpack.c.l.b16 %v280
    %v543 = vunpack.c.h.b16 %v280
    %v544 = vunpack.c.l.b16 %v281
    %v545 = vunpack.c.h.b16 %v281
    %v546 = vunpack.c.l.b16 %v282
    %v547 = vunpack.c.h.b16 %v282
    %v548 = vunpack.c.l.b16 %v283
    %v549 = vunpack.c.h.b16 %v283
    %v550 = vunpack.c.l.b16 %v284
    %v551 = vunpack.c.h.b16 %v284
    %v552 = vunpack.c.l.b16 %v285
    %v553 = vunpack.c.h.b16 %v285
    %v554 = vunpack.c.l.b16 %v286
    %v555 = vunpack.c.h.b16 %v286
    %v556 = vunpack.c.l.b16 %v287
    %v557 = vunpack.c.h.b16 %v287
    %v558 = vunpack.c.l.b16 %v288
    %v559 = vunpack.c.h.b16 %v288
    %v560 = vunpack.c.l.b16 %v289
    %v561 = vunpack.c.h.b16 %v289
    %v562 = vunpack.c.l.b16 %v290
    %v563 = vunpack.c.h.b16 %v290
    %v564 = vunpack.c.l.b16 %v291
    %v565 = vunpack.c.h.b16 %v291
    %v566 = vunpack.c.l.b16 %v292
    %v567 = vunpack.c.h.b16 %v292
    %v568 = vunpack.c.l.b16 %v293
    %v569 = vunpack.c.h.b16 %v293
    %v570 = vunpack.c.l.b16 %v294
    %v571 = vunpack.c.h.b16 %v294
    %v572 = vunpack.c.l.b16 %v295
    %v573 = vunpack.c.h.b16 %v295
    %v574 = vunpack.c.l.b16 %v296
    %v575 = vunpack.c.h.b16 %v296
    %v576 = vunpack.c.l.b16 %v297
    %v577 = vunpack.c.h.b16 %v297
    %v578 = vunpack.c.l.b16 %v298
    %v579 = vunpack.c.h.b16 %v298
    %v580 = vunpack.c.l.b16 %v299
    %v581 = vunpack.c.h.b16 %v299
    %v582 = vunpack.c.l.b16 %v300
    %v583 = vunpack.c.h.b16 %v300
    %v584 = vunpack.c.l.b16 %v301
    %v585 = vunpack.c.h.b16 %v301
    %v586 = vunpack.c.l.b16 %v302
    %v587 = vunpack.c.h.b16 %v302
    %v588 = vunpack.c.l.b16 %v303
    %v589 = vunpack.c.h.b16 %v303
    %v590 = vunpack.c.l.b16 %v304
    %v591 = vunpack.c.h.b16 %v304
    %v592 = vunpack.c.l.b16 %v305
    %v593 = vunpack.c.h.b16 %v305
    %v594 = vunpack.c.l.b16 %v306
    %v595 = vunpack.c.h.b16 %v306
    %v596 = vunpack.c.l.b16 %v307
    %v597 = vunpack.c.h.b16 %v307
    %v598 = vunpack.c.l.b16 %v308
    %v599 = vunpack.c.h.b16 %v308
    %v600 = vunpack.c.l.b16 %v309
    %v601 = vunpack.c.h.b16 %v309
    %v602 = vunpack.c.l.b16 %v310
    %v603 = vunpack.c.h.b16 %v310
    %v604 = vunpack.c.l.b16 %v311
    %v605 = vunpack.c.h.b16 %v311
    %v606 = vunpack.c.l.b16 %v312
    %v607 = vunpack.c.h.b16 %v312
    %v608 = vunpack.c.l.b16 %v313
    %v609 = vunpack.c.h.b16 %v313
    %v610 = vunpack.c.l.b16 %v314
    %v611 = vunpack.c.h.b16 %v314
    %v612 = vunpack.c.l.b16 %v315
    %v613 = vunpack.c.h.b16 %v315
    %v614 = vunpack.c.l.b16 %v316
    %v615 = vunpack.c.h.b16 %v316
    %v616 = vunpack.c.l.b16 %v317
    %v617 = vunpack.c.h.b16 %v317
    %v618 = vunpack.c.l.b16 %v318
    %v619 = vunpack.c.h.b16 %v318
    %v620 = vunpack.c.l.b16 %v319
    %v621 = vunpack.c.h.b16 %v319
    %v622 = vunpack.c.l.b16 %v320
    %v623 = vunpack.c.h.b16 %v320
    %v624 = vunpack.c.l.b16 %v321
    %v625 = vunpack.c.h.b16 %v321
    %v626 = vunpack.c.l.b16 %v322
    %v627 = vunpack.c.h.b16 %v322
    %v628 = vunpack.c.l.b16 %v323
    %v629 = vunpack.c.h.b16 %v323
    %v630 = vunpack.c.l.b16 %v324
    %v631 = vunpack.c.h.b16 %v324
    %v632 = vunpack.c.l.b16 %v325
    %v633 = vunpack.c.h.b16 %v325
    %v634 = vunpack.c.l.b16 %v326
    %v635 = vunpack.c.h.b16 %v326
    %v636 = vunpack.c.l.b16 %v327
    %v637 = vunpack.c.h.b16 %v327
    %v638 = vunpack.c.l.b16 %v328
    %v639 = vunpack.c.h.b16 %v328
    %v640 = vunpack.c.l.b16 %v329
    %v641 = vunpack.c.h.b16 %v329
    %v642 = vunpack.c.l.b16 %v330
    %v643 = vunpack.c.h.b16 %v330
    %v644 = vunpack.c.l.b16 %v331
    %v645 = vunpack.c.h.b16 %v331
    %v646 = vunpack.c.l.b16 %v332
    %v647 = vunpack.c.h.b16 %v332
    %v648 = vunpack.c.l.b16 %v333
    %v649 = vunpack.c.h.b16 %v333
    %v650 = vunpack.c.l.b16 %v334
    %v651 = vunpack.c.h.b16 %v334
    %v652 = vunpack.c.l.b16 %v335
    %v653 = vunpack.c.h.b16 %v335
    %v654 = vunpack.c.l.b16 %v336
    %v655 = vunpack.c.h.b16 %v336
    %v656 = vunpack.c.l.b16 %v337
    %v657 = vunpack.c.h.b16 %v337
    %v658 = vunpack.c.l.b16 %v338
    %v659 = vunpack.c.h.b16 %v338
    %v660 = vunpack.c.l.b16 %v339
    %v661 = vunpack.c.h.b16 %v339
    %v662 = vunpack.c.l.b16 %v340
    %v663 = vunpack.c.h.b16 %v340
    %v664 = vunpack.c.l.b16 %v341
    %v665 = vunpack.c.h.b16 %v341
    %v666 = vunpack.c.l.b16 %v342
    %v667 = vunpack.c.h.b16 %v342
    %v668 = vunpack.c.l.b16 %v343
    %v669 = vunpack.c.h.b16 %v343
    %v670 = vunpack.c.l.b16 %v344
    %v671 = vunpack.c.h.b16 %v344
    %v672 = vunpack.c.l.b16 %v345
    %v673 = vunpack.c.h.b16 %v345
    %v674 = vunpack.c.l.b16 %v346
    %v675 = vunpack.c.h.b16 %v346
    %v676 = vunpack.c.l.b16 %v347
    %v677 = vunpack.c.h.b16 %v347
    %v678 = vunpack.c.l.b16 %v348
    %v679 = vunpack.c.h.b16 %v348
    %v680 = vunpack.c.l.b16 %v349
    %v681 = vunpack.c.h.b16 %v349
    %v682 = vunpack.c.l.b16 %v350
    %v683 = vunpack.c.h.b16 %v350
    %v684 = vunpack.c.l.b16 %v351
    %v685 = vunpack.c.h.b16 %v351
    %v686 = vunpack.c.l.b16 %v352
    %v687 = vunpack.c.h.b16 %v352
    %v688 = vunpack.c.l.b16 %v353
    %v689 = vunpack.c.h.b16 %v353
    %v690 = vunpack.c.l.b16 %v354
    %v691 = vunpack.c.h.b16 %v354
    %v692 = vunpack.c.l.b16 %v355
    %v693 = vunpack.c.h.b16 %v355
    %v694 = vunpack.c.l.b16 %v356
    %v695 = vunpack.c.h.b16 %v356
    %v696 = vunpack.c.l.b16 %v357
    %v697 = vunpack.c.h.b16 %v357
    %v698 = vunpack.c.l.b16 %v358
    %v699 = vunpack.c.h.b16 %v358
    %v700 = vunpack.c.l.b16 %v359
    %v701 = vunpack.c.h.b16 %v359
    %v702 = vunpack.c.l.b16 %v360
    %v703 = vunpack.c.h.b16 %v360
    %v704 = vunpack.c.l.b16 %v361
    %v705 = vunpack.c.h.b16 %v361
    %v706 = vunpack.c.l.b16 %v362
    %v707 = vunpack.c.h.b16 %v362
    %v708 = vunpack.c.l.b16 %v363
    %v709 = vunpack.c.h.b16 %v363
    %v710 = vunpack.c.l.b16 %v364
    %v711 = vunpack.c.h.b16 %v364
    %v712 = vunpack.c.l.b16 %v365
    %v713 = vunpack.c.h.b16 %v365
    %v714 = vunpack.c.l.b16 %v366
    %v715 = vunpack.c.h.b16 %v366
    %v716 = vunpack.c.l.b16 %v367
    %v717 = vunpack.c.h.b16 %v367
    %v718 = vunpack.c.l.b16 %v368
    %v719 = vunpack.c.h.b16 %v368
    %v720 = vunpack.c.l.b16 %v369
    %v721 = vunpack.c.h.b16 %v369
    %v722 = vunpack.c.l.b16 %v370
    %v723 = vunpack.c.h.b16 %v370
    %v724 = vunpack.c.l.b16 %v371
    %v725 = vunpack.c.h.b16 %v371
    %v726 = vunpack.c.l.b16 %v372
    %v727 = vunpack.c.h.b16 %v372
    %v728 = vunpack.c.l.b16 %v373
    %v729 = vunpack.c.h.b16 %v373
    %v730 = vunpack.c.l.b16 %v374
    %v731 = vunpack.c.h.b16 %v374
    %v732 = vunpack.c.l.b16 %v375
    %v733 = vunpack.c.h.b16 %v375
    %v734 = vunpack.c.l.b16 %v376
    %v735 = vunpack.c.h.b16 %v376
    %v736 = vunpack.c.l.b16 %v377
    %v737 = vunpack.c.h.b16 %v377
    %v738 = vunpack.c.l.b16 %v378
    %v739 = vunpack.c.h.b16 %v378
    %v740 = vunpack.c.l.b16 %v379
    %v741 = vunpack.c.h.b16 %v379
    %v742 = vunpack.c.l.b16 %v380
    %v743 = vunpack.c.h.b16 %v380
    %v744 = vunpack.c.l.b16 %v381
    %v745 = vunpack.c.h.b16 %v381
    %v746 = vunpack.c.l.b16 %v382
    %v747 = vunpack.c.h.b16 %v382
    %v748 = vunpack.c.l.b16 %v383
    %v749 = vunpack.c.h.b16 %v383
    %v750 = vunpack.c.l.b16 %v384
    %v751 = vunpack.c.h.b16 %v384
    %v752 = vunpack.c.l.b16 %v385
    %v753 = vunpack.c.h.b16 %v385
    %v754 = vunpack.c.l.b16 %v386
    %v755 = vunpack.c.h.b16 %v386
    %v756 = vunpack.c.l.b16 %v387
    %v757 = vunpack.c.h.b16 %v387
    %v758 = vunpack.c.l.b16 %v388
    %v759 = vunpack.c.h.b16 %v388
    %v760 = vunpack.c.l.b16 %v389
    %v761 = vunpack.c.h.b16 %v389
    %v762 = vunpack.c.l.b16 %v390
    %v763 = vunpack.c.h.b16 %v390
    %v764 = vunpack.c.l.b16 %v391
    %v765 = vunpack.c.h.b16 %v391
    %v766 = vunpack.c.l.b16 %v392
    %v767 = vunpack.c.h.b16 %v392
    %v768 = vunpack.c.l.b16 %v393
    %v769 = vunpack.c.h.b16 %v393
    %v770 = vunpack.c.l.b16 %v394
    %v771 = vunpack.c.h.b16 %v394
    %v772 = vunpack.c.l.b16 %v395
    %v773 = vunpack.c.h.b16 %v395
    %v774 = vunpack.c.l.b16 %v396
    %v775 = vunpack.c.h.b16 %v396
    %v776 = vunpack.c.l.b16 %v397
    %v777 = vunpack.c.h.b16 %v397
    %v778 = vunpack.c.l.b16 %v398
    %v779 = vunpack.c.h.b16 %v398
    %v780 = vunpack.c.l.b16 %v399
    %v781 = vunpack.c.h.b16 %v399
    %v782 = vunpack.c.l.b16 %v400
    %v783 = vunpack.c.h.b16 %v400
    %v784 = vunpack.c.l.b16 %v401
    %v785 = vunpack.c.h.b16 %v401
    %v786 = vunpack.c.l.b16 %v402
    %v787 = vunpack.c.h.b16 %v402
    %v788 = vpack.c.b16 %v536, %v532
    %v789 = vpack.c.b16 %v537, %v533
    %v790 = vpack.c.b16 %v538, %v534
    %v791 = vpack.c.b16 %v539, %v535
    %v792 = vpack.c.b16 %v544, %v540
    %v793 = vpack.c.b16 %v545, %v541
    %v794 = vpack.c.b16 %v546, %v542
    %v795 = vpack.c.b16 %v547, %v543
    %v796 = vpack.c.b16 %v552, %v548
    %v797 = vpack.c.b16 %v553, %v549
    %v798 = vpack.c.b16 %v554, %v550
    %v799 = vpack.c.b16 %v555, %v551
    %v800 = vpack.c.b16 %v560, %v556
    %v801 = vpack.c.b16 %v561, %v557
    %v802 = vpack.c.b16 %v562, %v558
    %v803 = vpack.c.b16 %v563, %v559
    %v804 = vpack.c.b16 %v568, %v564
    %v805 = vpack.c.b16 %v569, %v565
    %v806 = vpack.c.b16 %v570, %v566
    %v807 = vpack.c.b16 %v571, %v567
    %v808 = vpack.c.b16 %v576, %v572
    %v809 = vpack.c.b16 %v577, %v573
    %v810 = vpack.c.b16 %v578, %v574
    %v811 = vpack.c.b16 %v579, %v575
    %v812 = vpack.c.b16 %v584, %v580
    %v813 = vpack.c.b16 %v585, %v581
    %v814 = vpack.c.b16 %v586, %v582
    %v815 = vpack.c.b16 %v587, %v583
    %v816 = vpack.c.b16 %v592, %v588
    %v817 = vpack.c.b16 %v593, %v589
    %v818 = vpack.c.b16 %v594, %v590
    %v819 = vpack.c.b16 %v595, %v591
    %v820 = vpack.c.b16 %v600, %v596
    %v821 = vpack.c.b16 %v601, %v597
    %v822 = vpack.c.b16 %v602, %v598
    %v823 = vpack.c.b16 %v603, %v599
    %v824 = vpack.c.b16 %v608, %v604
    %v825 = vpack.c.b16 %v609, %v605
    %v826 = vpack.c.b16 %v610, %v606
    %v827 = vpack.c.b16 %v611, %v607
    %v828 = vpack.c.b16 %v616, %v612
    %v829 = vpack.c.b16 %v617, %v613
    %v830 = vpack.c.b16 %v618, %v614
    %v831 = vpack.c.b16 %v619, %v615
    %v832 = vpack.c.b16 %v624, %v620
    %v833 = vpack.c.b16 %v625, %v621
    %v834 = vpack.c.b16 %v626, %v622
    %v835 = vpack.c.b16 %v627, %v623
    %v836 = vpack.c.b16 %v632, %v628
    %v837 = vpack.c.b16 %v633, %v629
    %v838 = vpack.c.b16 %v634, %v630
    %v839 = vpack.c.b16 %v635, %v631
    %v840 = vpack.c.b16 %v640, %v636
    %v841 = vpack.c.b16 %v641, %v637
    %v842 = vpack.c.b16 %v642, %v638
    %v843 = vpack.c.b16 %v643, %v639
    %v844 = vpack.c.b16 %v648, %v644
    %v845 = vpack.c.b16 %v649, %v645
    %v846 = vpack.c.b16 %v650, %v646
    %v847 = vpack.c.b16 %v651, %v647
    %v848 = vpack.c.b16 %v656, %v652
    %v849 = vpack.c.b16 %v657, %v653
    %v850 = vpack.c.b16 %v658, %v654
    %v851 = vpack.c.b16 %v659, %v655
    %v852 = vpack.c.b16 %v664, %v660
    %v853 = vpack.c.b16 %v665, %v661
    %v854 = vpack.c.b16 %v666, %v662
    %v855 = vpack.c.b16 %v667, %v663
    %v856 = vpack.c.b16 %v672, %v668
    %v857 = vpack.c.b16 %v673, %v669
    %v858 = vpack.c.b16 %v674, %v670
    %v859 = vpack.c.b16 %v675, %v671
    %v860 = vpack.c.b16 %v680, %v676
    %v861 = vpack.c.b16 %v681, %v677
    %v862 = vpack.c.b16 %v682, %v678
    %v863 = vpack.c.b16 %v683, %v679
    %v864 = vpack.c.b16 %v688, %v684
    %v865 = vpack.c.b16 %v689, %v685
    %v866 = vpack.c.b16 %v690, %v686
    %v867 = vpack.c.b16 %v691, %v687
    %v868 = vpack.c.b16 %v696, %v692
    %v869 = vpack.c.b16 %v697, %v693
    %v870 = vpack.c.b16 %v698, %v694
    %v871 = vpack.c.b16 %v699, %v695
    %v872 = vpack.c.b16 %v704, %v700
    %v873 = vpack.c.b16 %v705, %v701
    %v874 = vpack.c.b16 %v706, %v702
    %v875 = vpack.c.b16 %v707, %v703
    %v876 = vpack.c.b16 %v712, %v708
    %v877 = vpack.c.b16 %v713, %v709
    %v878 = vpack.c.b16 %v714, %v710
    %v879 = vpack.c.b16 %v715, %v711
    %v880 = vpack.c.b16 %v720, %v716
    %v881 = vpack.c.b16 %v721, %v717
    %v882 = vpack.c.b16 %v722, %v718
    %v883 = vpack.c.b16 %v723, %v719
    %v884 = vpack.c.b16 %v728, %v724
    %v885 = vpack.c.b16 %v729, %v725
    %v886 = vpack.c.b16 %v730, %v726
    %v887 = vpack.c.b16 %v731, %v727
    %v888 = vpack.c.b16 %v736, %v732
    %v889 = vpack.c.b16 %v737, %v733
    %v890 = vpack.c.b16 %v738, %v734
    %v891 = vpack.c.b16 %v739, %v735
    %v892 = vpack.c.b16 %v744, %v740
    %v893 = vpack.c.b16 %v745, %v741
    %v894 = vpack.c.b16 %v746, %v742
    %v895 = vpack.c.b16 %v747, %v743
    %v896 = vpack.c.b16 %v752, %v748
    %v897 = vpack.c.b16 %v753, %v749
    %v898 = vpack.c.b16 %v754, %v750
    %v899 = vpack.c.b16 %v755, %v751
    %v900 = vpack.c.b16 %v760, %v756
    %v901 = vpack.c.b16 %v761, %v757
    %v902 = vpack.c.b16 %v762, %v758
    %v903 = vpack.c.b16 %v763, %v759
    %v904 = vpack.c.b16 %v768, %v764
    %v905 = vpack.c.b16 %v769, %v765
    %v906 = vpack.c.b16 %v770, %v766
    %v907 = vpack.c.b16 %v771, %v767
    %v908 = vpack.c.b16 %v776, %v772
    %v909 = vpack.c.b16 %v777, %v773
    %v910 = vpack.c.b16 %v778, %v774
    %v911 = vpack.c.b16 %v779, %v775
    %v912 = vpack.c.b16 %v784, %v780
    %v913 = vpack.c.b16 %v785, %v781
    %v914 = vpack.c.b16 %v786, %v782
    %v915 = vpack.c.b16 %v787, %v783
    %v1045 = vlaneseq
    %v1046 = vshrl.u32 %v1045, 7
    %v1047 = vsub.s32 0, %v1046
    %v1048 = vrot.slane %v403, %v1047
    %v1049 = vlaneseq
    %v1050 = vshrl.u32 %v1049, 7
    %v1051 = vsub.s32 1, %v1050
    %v1052 = vrot.slane %v403, %v1051
    %v1053 = vlaneseq
    %v1054 = vshrl.u32 %v1053, 7
    %v1055 = vsub.s32 2, %v1054
    %v1056 = vrot.slane %v403, %v1055
    %v1057 = vlaneseq
    %v1058 = vshrl.u32 %v1057, 7
    %v1059 = vsub.s32 3, %v1058
    %v1060 = vrot.slane %v403, %v1059
    %1065 = vmatprep.subr.bf16.mxu0 %v817
    %1066 = vmatpush1.bf16.msra.mxu0 %v816
    %1067 = vmatprep.subr.bf16.mxu0 %v813
    %1068 = vmatpush1.bf16.msra.mxu0 %v812
    %1069 = vmatprep.subr.bf16.mxu0 %v809
    %1070 = vmatpush1.bf16.msra.mxu0 %v808
    %1071 = vmatprep.subr.bf16.mxu0 %v805
    %1072 = vmatpush1.bf16.msra.mxu0 %v804
    %1073 = vmatprep.subr.bf16.mxu0 %v801
    %1074 = vmatpush1.bf16.msra.mxu0 %v800
    %1075 = vmatprep.subr.bf16.mxu0 %v797
    %1076 = vmatpush1.bf16.msra.mxu0 %v796
    %1077 = vmatprep.subr.bf16.mxu0 %v793
    %1078 = vmatpush1.bf16.msra.mxu0 %v792
    %1079 = vmatprep.subr.bf16.mxu0 %v789
    %1080 = vmatpush1.bf16.msra.mxu0 %v788
    %1081 = vmatprep.subr.bf16.mxu0 %v849
    %1082 = vmatpush2.bf16.msra.mxu0 %v848
    %1083 = vmatprep.subr.bf16.mxu0 %v845
    %1084 = vmatpush2.bf16.msra.mxu0 %v844
    %1085 = vmatprep.subr.bf16.mxu0 %v841
    %1086 = vmatpush2.bf16.msra.mxu0 %v840
    %1087 = vmatprep.subr.bf16.mxu0 %v837
    %1088 = vmatpush2.bf16.msra.mxu0 %v836
    %1089 = vmatprep.subr.bf16.mxu0 %v833
    %1090 = vmatpush2.bf16.msra.mxu0 %v832
    %1091 = vmatprep.subr.bf16.mxu0 %v829
    %1092 = vmatpush2.bf16.msra.mxu0 %v828
    %1093 = vmatprep.subr.bf16.mxu0 %v825
    %1094 = vmatpush2.bf16.msra.mxu0 %v824
    %1095 = vmatprep.subr.bf16.mxu0 %v821
    %1096 = vmatpush2.bf16.msra.mxu0 %v820
    %1097 = vmatprep.mubr.bf16.mxu0 %v272
    %1098 = vmatmul.mubr.bf16.gmra.mxu0 %v271
    %v1099 = vpop.f32.mrf.mxu0
    %v1100 = vadd.f32 %v1048, %v1099
    %v1101 = vpop.f32.mrf.mxu0
    %v1102 = vadd.f32 %v1052, %v1101
    %v1103 = vpop.f32.mrf.mxu0
    %v1104 = vpop.f32.mrf.mxu0
    %1105 = vdwg.mxu0
    %1106 = vmatprep.subr.bf16.mxu0 %v881
    %1107 = vmatpush1.bf16.msra.mxu0 %v880
    %1108 = vmatprep.subr.bf16.mxu0 %v877
    %1109 = vmatpush1.bf16.msra.mxu0 %v876
    %1110 = vmatprep.subr.bf16.mxu0 %v873
    %1111 = vmatpush1.bf16.msra.mxu0 %v872
    %1112 = vmatprep.subr.bf16.mxu0 %v869
    %1113 = vmatpush1.bf16.msra.mxu0 %v868
    %1114 = vmatprep.subr.bf16.mxu0 %v865
    %1115 = vmatpush1.bf16.msra.mxu0 %v864
    %1116 = vmatprep.subr.bf16.mxu0 %v861
    %1117 = vmatpush1.bf16.msra.mxu0 %v860
    %1118 = vmatprep.subr.bf16.mxu0 %v857
    %1119 = vmatpush1.bf16.msra.mxu0 %v856
    %1120 = vmatprep.subr.bf16.mxu0 %v853
    %1121 = vmatpush1.bf16.msra.mxu0 %v852
    %1122 = vmatprep.subr.bf16.mxu0 %v913
    %1123 = vmatpush2.bf16.msra.mxu0 %v912
    %1124 = vmatprep.subr.bf16.mxu0 %v909
    %1125 = vmatpush2.bf16.msra.mxu0 %v908
    %1126 = vmatprep.subr.bf16.mxu0 %v905
    %1127 = vmatpush2.bf16.msra.mxu0 %v904
    %1128 = vmatprep.subr.bf16.mxu0 %v901
    %1129 = vmatpush2.bf16.msra.mxu0 %v900
    %1130 = vmatprep.subr.bf16.mxu0 %v897
    %1131 = vmatpush2.bf16.msra.mxu0 %v896
    %1132 = vmatprep.subr.bf16.mxu0 %v893
    %1133 = vmatpush2.bf16.msra.mxu0 %v892
    %1134 = vmatprep.subr.bf16.mxu0 %v889
    %1135 = vmatpush2.bf16.msra.mxu0 %v888
    %1136 = vmatprep.subr.bf16.mxu0 %v885
    %1137 = vmatpush2.bf16.msra.mxu0 %v884
    %1138 = vmatprep.mubr.bf16.mxu0 %v274
    %1139 = vmatmul.mubr.bf16.gmra.mxu0 %v273
    %v1140 = vpop.f32.mrf.mxu0
    %v1141 = vadd.f32 %v1100, %v1140
    %v1142 = vpop.f32.mrf.mxu0
    %v1143 = vadd.f32 %v1102, %v1142
    %v1144 = vpop.f32.mrf.mxu0
    %v1145 = vpop.f32.mrf.mxu0
    %1146 = vdwg.mxu0
    %1147 = vmatprep.subr.bf16.mxu0 %v819
    %1148 = vmatpush1.bf16.msra.mxu0 %v818
    %1149 = vmatprep.subr.bf16.mxu0 %v815
    %1150 = vmatpush1.bf16.msra.mxu0 %v814
    %1151 = vmatprep.subr.bf16.mxu0 %v811
    %1152 = vmatpush1.bf16.msra.mxu0 %v810
    %1153 = vmatprep.subr.bf16.mxu0 %v807
    %1154 = vmatpush1.bf16.msra.mxu0 %v806
    %1155 = vmatprep.subr.bf16.mxu0 %v803
    %1156 = vmatpush1.bf16.msra.mxu0 %v802
    %1157 = vmatprep.subr.bf16.mxu0 %v799
    %1158 = vmatpush1.bf16.msra.mxu0 %v798
    %1159 = vmatprep.subr.bf16.mxu0 %v795
    %1160 = vmatpush1.bf16.msra.mxu0 %v794
    %1161 = vmatprep.subr.bf16.mxu0 %v791
    %1162 = vmatpush1.bf16.msra.mxu0 %v790
    %1163 = vmatprep.subr.bf16.mxu0 %v851
    %1164 = vmatpush2.bf16.msra.mxu0 %v850
    %1165 = vmatprep.subr.bf16.mxu0 %v847
    %1166 = vmatpush2.bf16.msra.mxu0 %v846
    %1167 = vmatprep.subr.bf16.mxu0 %v843
    %1168 = vmatpush2.bf16.msra.mxu0 %v842
    %1169 = vmatprep.subr.bf16.mxu0 %v839
    %1170 = vmatpush2.bf16.msra.mxu0 %v838
    %1171 = vmatprep.subr.bf16.mxu0 %v835
    %1172 = vmatpush2.bf16.msra.mxu0 %v834
    %1173 = vmatprep.subr.bf16.mxu0 %v831
    %1174 = vmatpush2.bf16.msra.mxu0 %v830
    %1175 = vmatprep.subr.bf16.mxu0 %v827
    %1176 = vmatpush2.bf16.msra.mxu0 %v826
    %1177 = vmatprep.subr.bf16.mxu0 %v823
    %1178 = vmatpush2.bf16.msra.mxu0 %v822
    %1179 = vmatprep.mubr.bf16.mxu0 %v272
    %1180 = vmatmul.mubr.bf16.gmra.mxu0 %v271
    %v1181 = vpop.f32.mrf.mxu0
    %v1182 = vadd.f32 %v1056, %v1181
    %v1183 = vpop.f32.mrf.mxu0
    %v1184 = vadd.f32 %v1060, %v1183
    %v1185 = vpop.f32.mrf.mxu0
    %v1186 = vpop.f32.mrf.mxu0
    %1187 = vdwg.mxu0
    %1188 = vmatprep.subr.bf16.mxu0 %v883
    %1189 = vmatpush1.bf16.msra.mxu0 %v882
    %1190 = vmatprep.subr.bf16.mxu0 %v879
    %1191 = vmatpush1.bf16.msra.mxu0 %v878
    %1192 = vmatprep.subr.bf16.mxu0 %v875
    %1193 = vmatpush1.bf16.msra.mxu0 %v874
    %1194 = vmatprep.subr.bf16.mxu0 %v871
    %1195 = vmatpush1.bf16.msra.mxu0 %v870
    %1196 = vmatprep.subr.bf16.mxu0 %v867
    %1197 = vmatpush1.bf16.msra.mxu0 %v866
    %1198 = vmatprep.subr.bf16.mxu0 %v863
    %1199 = vmatpush1.bf16.msra.mxu0 %v862
    %1200 = vmatprep.subr.bf16.mxu0 %v859
    %1201 = vmatpush1.bf16.msra.mxu0 %v858
    %1202 = vmatprep.subr.bf16.mxu0 %v855
    %1203 = vmatpush1.bf16.msra.mxu0 %v854
    %1204 = vmatprep.subr.bf16.mxu0 %v915
    %1205 = vmatpush2.bf16.msra.mxu0 %v914
    %1206 = vmatprep.subr.bf16.mxu0 %v911
    %1207 = vmatpush2.bf16.msra.mxu0 %v910
    %1208 = vmatprep.subr.bf16.mxu0 %v907
    %1209 = vmatpush2.bf16.msra.mxu0 %v906
    %1210 = vmatprep.subr.bf16.mxu0 %v903
    %1211 = vmatpush2.bf16.msra.mxu0 %v902
    %1212 = vmatprep.subr.bf16.mxu0 %v899
    %1213 = vmatpush2.bf16.msra.mxu0 %v898
    %1214 = vmatprep.subr.bf16.mxu0 %v895
    %1215 = vmatpush2.bf16.msra.mxu0 %v894
    %1216 = vmatprep.subr.bf16.mxu0 %v891
    %1217 = vmatpush2.bf16.msra.mxu0 %v890
    %1218 = vmatprep.subr.bf16.mxu0 %v887
    %1219 = vmatpush2.bf16.msra.mxu0 %v886
    %1220 = vmatprep.mubr.bf16.mxu0 %v274
    %1221 = vmatmul.mubr.bf16.gmra.mxu0 %v273
    %v1222 = vpop.f32.mrf.mxu0
    %v1223 = vadd.f32 %v1182, %v1222
    %v1224 = vpop.f32.mrf.mxu0
    %v1225 = vadd.f32 %v1184, %v1224
    %v1226 = vpop.f32.mrf.mxu0
    %v1227 = vpop.f32.mrf.mxu0
    %1228 = vdwg.mxu0
    %v1229 = vmax.f32 %v1141, 0.0
    %v1230 = vmax.f32 %v1143, 0.0
    %v1231 = vmax.f32 %v1223, 0.0
    %v1232 = vmax.f32 %v1225, 0.0
    %v1233 = vpack.c.bf16 %v1229, %v1229
    %v1234 = vpack.c.bf16 %v1230, %v1230
    %v1235 = vpack.c.bf16 %v1231, %v1231
    %v1236 = vpack.c.bf16 %v1232, %v1232
    %v1237 = vld [vmem:[#allocation7] sm:$0xff]
    %v1238 = vld [vmem:[#allocation7 + $0x8] sm:$0xff]
    %v1239 = vld [vmem:[#allocation7 + $0x10] sm:$0xff]
    %v1240 = vld [vmem:[#allocation7 + $0x18] sm:$0xff]
    %v1241 = vld [vmem:[#allocation7 + $0x20] sm:$0xff]
    %v1242 = vld [vmem:[#allocation7 + $0x28] sm:$0xff]
    %v1243 = vld [vmem:[#allocation7 + $0x30] sm:$0xff]
    %v1244 = vld [vmem:[#allocation7 + $0x38] sm:$0xff]
    %v1245 = vld [vmem:[#allocation7 + $0x40] sm:$0xff]
    %v1246 = vld [vmem:[#allocation7 + $0x48] sm:$0xff]
    %v1247 = vld [vmem:[#allocation7 + $0x50] sm:$0xff]
    %v1248 = vld [vmem:[#allocation7 + $0x58] sm:$0xff]
    %v1249 = vld [vmem:[#allocation7 + $0x60] sm:$0xff]
    %v1250 = vld [vmem:[#allocation7 + $0x68] sm:$0xff]
    %v1251 = vld [vmem:[#allocation7 + $0x70] sm:$0xff]
    %v1252 = vld [vmem:[#allocation7 + $0x78] sm:$0xff]
    %v1253 = vld [vmem:[#allocation7 + $0x80] sm:$0xff]
    %v1254 = vld [vmem:[#allocation7 + $0x88] sm:$0xff]
    %v1255 = vld [vmem:[#allocation7 + $0x90] sm:$0xff]
    %v1256 = vld [vmem:[#allocation7 + $0x98] sm:$0xff]
    %v1257 = vld [vmem:[#allocation7 + $0xa0] sm:$0xff]
    %v1258 = vld [vmem:[#allocation7 + $0xa8] sm:$0xff]
    %v1259 = vld [vmem:[#allocation7 + $0xb0] sm:$0xff]
    %v1260 = vld [vmem:[#allocation7 + $0xb8] sm:$0xff]
    %v1261 = vld [vmem:[#allocation7 + $0xc0] sm:$0xff]
    %v1262 = vld [vmem:[#allocation7 + $0xc8] sm:$0xff]
    %v1263 = vld [vmem:[#allocation7 + $0xd0] sm:$0xff]
    %v1264 = vld [vmem:[#allocation7 + $0xd8] sm:$0xff]
    %v1265 = vld [vmem:[#allocation7 + $0xe0] sm:$0xff]
    %v1266 = vld [vmem:[#allocation7 + $0xe8] sm:$0xff]
    %v1267 = vld [vmem:[#allocation7 + $0xf0] sm:$0xff]
    %v1268 = vld [vmem:[#allocation7 + $0xf8] sm:$0xff]
    %v1269 = vld [vmem:[#allocation7 + $0x100] sm:$0xff]
    %v1270 = vld [vmem:[#allocation7 + $0x108] sm:$0xff]
    %v1271 = vld [vmem:[#allocation7 + $0x110] sm:$0xff]
    %v1272 = vld [vmem:[#allocation7 + $0x118] sm:$0xff]
    %v1273 = vld [vmem:[#allocation7 + $0x120] sm:$0xff]
    %v1274 = vld [vmem:[#allocation7 + $0x128] sm:$0xff]
    %v1275 = vld [vmem:[#allocation7 + $0x130] sm:$0xff]
    %v1276 = vld [vmem:[#allocation7 + $0x138] sm:$0xff]
    %v1277 = vld [vmem:[#allocation7 + $0x140] sm:$0xff]
    %v1278 = vld [vmem:[#allocation7 + $0x148] sm:$0xff]
    %v1279 = vld [vmem:[#allocation7 + $0x150] sm:$0xff]
    %v1280 = vld [vmem:[#allocation7 + $0x158] sm:$0xff]
    %v1281 = vld [vmem:[#allocation7 + $0x160] sm:$0xff]
    %v1282 = vld [vmem:[#allocation7 + $0x168] sm:$0xff]
    %v1283 = vld [vmem:[#allocation7 + $0x170] sm:$0xff]
    %v1284 = vld [vmem:[#allocation7 + $0x178] sm:$0xff]
    %v1285 = vld [vmem:[#allocation7 + $0x180] sm:$0xff]
    %v1286 = vld [vmem:[#allocation7 + $0x188] sm:$0xff]
    %v1287 = vld [vmem:[#allocation7 + $0x190] sm:$0xff]
    %v1288 = vld [vmem:[#allocation7 + $0x198] sm:$0xff]
    %v1289 = vld [vmem:[#allocation7 + $0x1a0] sm:$0xff]
    %v1290 = vld [vmem:[#allocation7 + $0x1a8] sm:$0xff]
    %v1291 = vld [vmem:[#allocation7 + $0x1b0] sm:$0xff]
    %v1292 = vld [vmem:[#allocation7 + $0x1b8] sm:$0xff]
    %v1293 = vld [vmem:[#allocation7 + $0x1c0] sm:$0xff]
    %v1294 = vld [vmem:[#allocation7 + $0x1c8] sm:$0xff]
    %v1295 = vld [vmem:[#allocation7 + $0x1d0] sm:$0xff]
    %v1296 = vld [vmem:[#allocation7 + $0x1d8] sm:$0xff]
    %v1297 = vld [vmem:[#allocation7 + $0x1e0] sm:$0xff]
    %v1298 = vld [vmem:[#allocation7 + $0x1e8] sm:$0xff]
    %v1299 = vld [vmem:[#allocation7 + $0x1f0] sm:$0xff]
    %v1300 = vld [vmem:[#allocation7 + $0x1f8] sm:$0xff]
    %v1301 = vld [vmem:[%s9] sm:$0x3]
    %v1366 = vunpack.c.l.b16 %v1237
    %v1367 = vunpack.c.h.b16 %v1237
    %v1368 = vunpack.c.l.b16 %v1238
    %v1369 = vunpack.c.h.b16 %v1238
    %v1370 = vunpack.c.l.b16 %v1239
    %v1371 = vunpack.c.h.b16 %v1239
    %v1372 = vunpack.c.l.b16 %v1240
    %v1373 = vunpack.c.h.b16 %v1240
    %v1374 = vunpack.c.l.b16 %v1241
    %v1375 = vunpack.c.h.b16 %v1241
    %v1376 = vunpack.c.l.b16 %v1242
    %v1377 = vunpack.c.h.b16 %v1242
    %v1378 = vunpack.c.l.b16 %v1243
    %v1379 = vunpack.c.h.b16 %v1243
    %v1380 = vunpack.c.l.b16 %v1244
    %v1381 = vunpack.c.h.b16 %v1244
    %v1382 = vunpack.c.l.b16 %v1245
    %v1383 = vunpack.c.h.b16 %v1245
    %v1384 = vunpack.c.l.b16 %v1246
    %v1385 = vunpack.c.h.b16 %v1246
    %v1386 = vunpack.c.l.b16 %v1247
    %v1387 = vunpack.c.h.b16 %v1247
    %v1388 = vunpack.c.l.b16 %v1248
    %v1389 = vunpack.c.h.b16 %v1248
    %v1390 = vunpack.c.l.b16 %v1249
    %v1391 = vunpack.c.h.b16 %v1249
    %v1392 = vunpack.c.l.b16 %v1250
    %v1393 = vunpack.c.h.b16 %v1250
    %v1394 = vunpack.c.l.b16 %v1251
    %v1395 = vunpack.c.h.b16 %v1251
    %v1396 = vunpack.c.l.b16 %v1252
    %v1397 = vunpack.c.h.b16 %v1252
    %v1398 = vunpack.c.l.b16 %v1253
    %v1399 = vunpack.c.h.b16 %v1253
    %v1400 = vunpack.c.l.b16 %v1254
    %v1401 = vunpack.c.h.b16 %v1254
    %v1402 = vunpack.c.l.b16 %v1255
    %v1403 = vunpack.c.h.b16 %v1255
    %v1404 = vunpack.c.l.b16 %v1256
    %v1405 = vunpack.c.h.b16 %v1256
    %v1406 = vunpack.c.l.b16 %v1257
    %v1407 = vunpack.c.h.b16 %v1257
    %v1408 = vunpack.c.l.b16 %v1258
    %v1409 = vunpack.c.h.b16 %v1258
    %v1410 = vunpack.c.l.b16 %v1259
    %v1411 = vunpack.c.h.b16 %v1259
    %v1412 = vunpack.c.l.b16 %v1260
    %v1413 = vunpack.c.h.b16 %v1260
    %v1414 = vunpack.c.l.b16 %v1261
    %v1415 = vunpack.c.h.b16 %v1261
    %v1416 = vunpack.c.l.b16 %v1262
    %v1417 = vunpack.c.h.b16 %v1262
    %v1418 = vunpack.c.l.b16 %v1263
    %v1419 = vunpack.c.h.b16 %v1263
    %v1420 = vunpack.c.l.b16 %v1264
    %v1421 = vunpack.c.h.b16 %v1264
    %v1422 = vunpack.c.l.b16 %v1265
    %v1423 = vunpack.c.h.b16 %v1265
    %v1424 = vunpack.c.l.b16 %v1266
    %v1425 = vunpack.c.h.b16 %v1266
    %v1426 = vunpack.c.l.b16 %v1267
    %v1427 = vunpack.c.h.b16 %v1267
    %v1428 = vunpack.c.l.b16 %v1268
    %v1429 = vunpack.c.h.b16 %v1268
    %v1430 = vunpack.c.l.b16 %v1269
    %v1431 = vunpack.c.h.b16 %v1269
    %v1432 = vunpack.c.l.b16 %v1270
    %v1433 = vunpack.c.h.b16 %v1270
    %v1434 = vunpack.c.l.b16 %v1271
    %v1435 = vunpack.c.h.b16 %v1271
    %v1436 = vunpack.c.l.b16 %v1272
    %v1437 = vunpack.c.h.b16 %v1272
    %v1438 = vunpack.c.l.b16 %v1273
    %v1439 = vunpack.c.h.b16 %v1273
    %v1440 = vunpack.c.l.b16 %v1274
    %v1441 = vunpack.c.h.b16 %v1274
    %v1442 = vunpack.c.l.b16 %v1275
    %v1443 = vunpack.c.h.b16 %v1275
    %v1444 = vunpack.c.l.b16 %v1276
    %v1445 = vunpack.c.h.b16 %v1276
    %v1446 = vunpack.c.l.b16 %v1277
    %v1447 = vunpack.c.h.b16 %v1277
    %v1448 = vunpack.c.l.b16 %v1278
    %v1449 = vunpack.c.h.b16 %v1278
    %v1450 = vunpack.c.l.b16 %v1279
    %v1451 = vunpack.c.h.b16 %v1279
    %v1452 = vunpack.c.l.b16 %v1280
    %v1453 = vunpack.c.h.b16 %v1280
    %v1454 = vunpack.c.l.b16 %v1281
    %v1455 = vunpack.c.h.b16 %v1281
    %v1456 = vunpack.c.l.b16 %v1282
    %v1457 = vunpack.c.h.b16 %v1282
    %v1458 = vunpack.c.l.b16 %v1283
    %v1459 = vunpack.c.h.b16 %v1283
    %v1460 = vunpack.c.l.b16 %v1284
    %v1461 = vunpack.c.h.b16 %v1284
    %v1462 = vunpack.c.l.b16 %v1285
    %v1463 = vunpack.c.h.b16 %v1285
    %v1464 = vunpack.c.l.b16 %v1286
    %v1465 = vunpack.c.h.b16 %v1286
    %v1466 = vunpack.c.l.b16 %v1287
    %v1467 = vunpack.c.h.b16 %v1287
    %v1468 = vunpack.c.l.b16 %v1288
    %v1469 = vunpack.c.h.b16 %v1288
    %v1470 = vunpack.c.l.b16 %v1289
    %v1471 = vunpack.c.h.b16 %v1289
    %v1472 = vunpack.c.l.b16 %v1290
    %v1473 = vunpack.c.h.b16 %v1290
    %v1474 = vunpack.c.l.b16 %v1291
    %v1475 = vunpack.c.h.b16 %v1291
    %v1476 = vunpack.c.l.b16 %v1292
    %v1477 = vunpack.c.h.b16 %v1292
    %v1478 = vunpack.c.l.b16 %v1293
    %v1479 = vunpack.c.h.b16 %v1293
    %v1480 = vunpack.c.l.b16 %v1294
    %v1481 = vunpack.c.h.b16 %v1294
    %v1482 = vunpack.c.l.b16 %v1295
    %v1483 = vunpack.c.h.b16 %v1295
    %v1484 = vunpack.c.l.b16 %v1296
    %v1485 = vunpack.c.h.b16 %v1296
    %v1486 = vunpack.c.l.b16 %v1297
    %v1487 = vunpack.c.h.b16 %v1297
    %v1488 = vunpack.c.l.b16 %v1298
    %v1489 = vunpack.c.h.b16 %v1298
    %v1490 = vunpack.c.l.b16 %v1299
    %v1491 = vunpack.c.h.b16 %v1299
    %v1492 = vunpack.c.l.b16 %v1300
    %v1493 = vunpack.c.h.b16 %v1300
    %v1494 = vpack.c.b16 %v1368, %v1366
    %v1495 = vpack.c.b16 %v1369, %v1367
    %v1496 = vpack.c.b16 %v1372, %v1370
    %v1497 = vpack.c.b16 %v1373, %v1371
    %v1498 = vpack.c.b16 %v1376, %v1374
    %v1499 = vpack.c.b16 %v1377, %v1375
    %v1500 = vpack.c.b16 %v1380, %v1378
    %v1501 = vpack.c.b16 %v1381, %v1379
    %v1502 = vpack.c.b16 %v1384, %v1382
    %v1503 = vpack.c.b16 %v1385, %v1383
    %v1504 = vpack.c.b16 %v1388, %v1386
    %v1505 = vpack.c.b16 %v1389, %v1387
    %v1506 = vpack.c.b16 %v1392, %v1390
    %v1507 = vpack.c.b16 %v1393, %v1391
    %v1508 = vpack.c.b16 %v1396, %v1394
    %v1509 = vpack.c.b16 %v1397, %v1395
    %v1510 = vpack.c.b16 %v1400, %v1398
    %v1511 = vpack.c.b16 %v1401, %v1399
    %v1512 = vpack.c.b16 %v1404, %v1402
    %v1513 = vpack.c.b16 %v1405, %v1403
    %v1514 = vpack.c.b16 %v1408, %v1406
    %v1515 = vpack.c.b16 %v1409, %v1407
    %v1516 = vpack.c.b16 %v1412, %v1410
    %v1517 = vpack.c.b16 %v1413, %v1411
    %v1518 = vpack.c.b16 %v1416, %v1414
    %v1519 = vpack.c.b16 %v1417, %v1415
    %v1520 = vpack.c.b16 %v1420, %v1418
    %v1521 = vpack.c.b16 %v1421, %v1419
    %v1522 = vpack.c.b16 %v1424, %v1422
    %v1523 = vpack.c.b16 %v1425, %v1423
    %v1524 = vpack.c.b16 %v1428, %v1426
    %v1525 = vpack.c.b16 %v1429, %v1427
    %v1526 = vpack.c.b16 %v1432, %v1430
    %v1527 = vpack.c.b16 %v1433, %v1431
    %v1528 = vpack.c.b16 %v1436, %v1434
    %v1529 = vpack.c.b16 %v1437, %v1435
    %v1530 = vpack.c.b16 %v1440, %v1438
    %v1531 = vpack.c.b16 %v1441, %v1439
    %v1532 = vpack.c.b16 %v1444, %v1442
    %v1533 = vpack.c.b16 %v1445, %v1443
    %v1534 = vpack.c.b16 %v1448, %v1446
    %v1535 = vpack.c.b16 %v1449, %v1447
    %v1536 = vpack.c.b16 %v1452, %v1450
    %v1537 = vpack.c.b16 %v1453, %v1451
    %v1538 = vpack.c.b16 %v1456, %v1454
    %v1539 = vpack.c.b16 %v1457, %v1455
    %v1540 = vpack.c.b16 %v1460, %v1458
    %v1541 = vpack.c.b16 %v1461, %v1459
    %v1542 = vpack.c.b16 %v1464, %v1462
    %v1543 = vpack.c.b16 %v1465, %v1463
    %v1544 = vpack.c.b16 %v1468, %v1466
    %v1545 = vpack.c.b16 %v1469, %v1467
    %v1546 = vpack.c.b16 %v1472, %v1470
    %v1547 = vpack.c.b16 %v1473, %v1471
    %v1548 = vpack.c.b16 %v1476, %v1474
    %v1549 = vpack.c.b16 %v1477, %v1475
    %v1550 = vpack.c.b16 %v1480, %v1478
    %v1551 = vpack.c.b16 %v1481, %v1479
    %v1552 = vpack.c.b16 %v1484, %v1482
    %v1553 = vpack.c.b16 %v1485, %v1483
    %v1554 = vpack.c.b16 %v1488, %v1486
    %v1555 = vpack.c.b16 %v1489, %v1487
    %v1556 = vpack.c.b16 %v1492, %v1490
    %v1557 = vpack.c.b16 %v1493, %v1491
    %v1623 = vlaneseq
    %v1624 = vshrl.u32 %v1623, 7
    %v1625 = vsub.s32 0, %v1624
    %v1626 = vrot.slane %v1301, %v1625
    %v1627 = vlaneseq
    %v1628 = vshrl.u32 %v1627, 7
    %v1629 = vsub.s32 1, %v1628
    %v1630 = vrot.slane %v1301, %v1629
    %1633 = vmatprep.subr.bf16.mxu0 %v1509
    %1634 = vmatpush1.bf16.msra.mxu0 %v1508
    %1635 = vmatprep.subr.bf16.mxu0 %v1507
    %1636 = vmatpush1.bf16.msra.mxu0 %v1506
    %1637 = vmatprep.subr.bf16.mxu0 %v1505
    %1638 = vmatpush1.bf16.msra.mxu0 %v1504
    %1639 = vmatprep.subr.bf16.mxu0 %v1503
    %1640 = vmatpush1.bf16.msra.mxu0 %v1502
    %1641 = vmatprep.subr.bf16.mxu0 %v1501
    %1642 = vmatpush1.bf16.msra.mxu0 %v1500
    %1643 = vmatprep.subr.bf16.mxu0 %v1499
    %1644 = vmatpush1.bf16.msra.mxu0 %v1498
    %1645 = vmatprep.subr.bf16.mxu0 %v1497
    %1646 = vmatpush1.bf16.msra.mxu0 %v1496
    %1647 = vmatprep.subr.bf16.mxu0 %v1495
    %1648 = vmatpush1.bf16.msra.mxu0 %v1494
    %1649 = vmatprep.subr.bf16.mxu0 %v1525
    %1650 = vmatpush2.bf16.msra.mxu0 %v1524
    %1651 = vmatprep.subr.bf16.mxu0 %v1523
    %1652 = vmatpush2.bf16.msra.mxu0 %v1522
    %1653 = vmatprep.subr.bf16.mxu0 %v1521
    %1654 = vmatpush2.bf16.msra.mxu0 %v1520
    %1655 = vmatprep.subr.bf16.mxu0 %v1519
    %1656 = vmatpush2.bf16.msra.mxu0 %v1518
    %1657 = vmatprep.subr.bf16.mxu0 %v1517
    %1658 = vmatpush2.bf16.msra.mxu0 %v1516
    %1659 = vmatprep.subr.bf16.mxu0 %v1515
    %1660 = vmatpush2.bf16.msra.mxu0 %v1514
    %1661 = vmatprep.subr.bf16.mxu0 %v1513
    %1662 = vmatpush2.bf16.msra.mxu0 %v1512
    %1663 = vmatprep.subr.bf16.mxu0 %v1511
    %1664 = vmatpush2.bf16.msra.mxu0 %v1510
    %1665 = vmatprep.mubr.bf16.mxu0 %v1234
    %1666 = vmatmul.mubr.bf16.gmra.mxu0 %v1233
    %v1667 = vpop.f32.mrf.mxu0
    %v1668 = vadd.f32 %v1626, %v1667
    %v1669 = vpop.f32.mrf.mxu0
    %v1670 = vadd.f32 %v1630, %v1669
    %v1671 = vpop.f32.mrf.mxu0
    %v1672 = vpop.f32.mrf.mxu0
    %1673 = vdwg.mxu0
    %1674 = vmatprep.subr.bf16.mxu0 %v1541
    %1675 = vmatpush1.bf16.msra.mxu0 %v1540
    %1676 = vmatprep.subr.bf16.mxu0 %v1539
    %1677 = vmatpush1.bf16.msra.mxu0 %v1538
    %1678 = vmatprep.subr.bf16.mxu0 %v1537
    %1679 = vmatpush1.bf16.msra.mxu0 %v1536
    %1680 = vmatprep.subr.bf16.mxu0 %v1535
    %1681 = vmatpush1.bf16.msra.mxu0 %v1534
    %1682 = vmatprep.subr.bf16.mxu0 %v1533
    %1683 = vmatpush1.bf16.msra.mxu0 %v1532
    %1684 = vmatprep.subr.bf16.mxu0 %v1531
    %1685 = vmatpush1.bf16.msra.mxu0 %v1530
    %1686 = vmatprep.subr.bf16.mxu0 %v1529
    %1687 = vmatpush1.bf16.msra.mxu0 %v1528
    %1688 = vmatprep.subr.bf16.mxu0 %v1527
    %1689 = vmatpush1.bf16.msra.mxu0 %v1526
    %1690 = vmatprep.subr.bf16.mxu0 %v1557
    %1691 = vmatpush2.bf16.msra.mxu0 %v1556
    %1692 = vmatprep.subr.bf16.mxu0 %v1555
    %1693 = vmatpush2.bf16.msra.mxu0 %v1554
    %1694 = vmatprep.subr.bf16.mxu0 %v1553
    %1695 = vmatpush2.bf16.msra.mxu0 %v1552
    %1696 = vmatprep.subr.bf16.mxu0 %v1551
    %1697 = vmatpush2.bf16.msra.mxu0 %v1550
    %1698 = vmatprep.subr.bf16.mxu0 %v1549
    %1699 = vmatpush2.bf16.msra.mxu0 %v1548
    %1700 = vmatprep.subr.bf16.mxu0 %v1547
    %1701 = vmatpush2.bf16.msra.mxu0 %v1546
    %1702 = vmatprep.subr.bf16.mxu0 %v1545
    %1703 = vmatpush2.bf16.msra.mxu0 %v1544
    %1704 = vmatprep.subr.bf16.mxu0 %v1543
    %1705 = vmatpush2.bf16.msra.mxu0 %v1542
    %1706 = vmatprep.mubr.bf16.mxu0 %v1236
    %1707 = vmatmul.mubr.bf16.gmra.mxu0 %v1235
    %v1708 = vpop.f32.mrf.mxu0
    %v1709 = vadd.f32 %v1668, %v1708
    %v1710 = vpop.f32.mrf.mxu0
    %v1711 = vadd.f32 %v1670, %v1710
    %v1712 = vpop.f32.mrf.mxu0
    %v1713 = vpop.f32.mrf.mxu0
    %1714 = vdwg.mxu0
    %v1715 = vmax.f32 %v1709, 0.0
    %v1716 = vmax.f32 %v1711, 0.0
    %v1717 = vpack.c.bf16 %v1715, %v1715
    %v1718 = vpack.c.bf16 %v1716, %v1716
    %v1719 = vld [vmem:[%s10] sm:$0xf]
    %v1720 = vld [vmem:[%s10 + $0x4] sm:$0xf]
    %v1721 = vld [vmem:[%s10 + $0x8] sm:$0xf]
    %v1722 = vld [vmem:[%s10 + $0xc] sm:$0xf]
    %v1723 = vld [vmem:[%s10 + $0x10] sm:$0xf]
    %v1724 = vld [vmem:[%s10 + $0x14] sm:$0xf]
    %v1725 = vld [vmem:[%s10 + $0x18] sm:$0xf]
    %v1726 = vld [vmem:[%s10 + $0x1c] sm:$0xf]
    %v1727 = vld [vmem:[%s10 + $0x20] sm:$0xf]
    %v1728 = vld [vmem:[%s10 + $0x24] sm:$0xf]
    %v1729 = vld [vmem:[%s10 + $0x28] sm:$0xf]
    %v1730 = vld [vmem:[%s10 + $0x2c] sm:$0xf]
    %v1731 = vld [vmem:[%s10 + $0x30] sm:$0xf]
    %v1732 = vld [vmem:[%s10 + $0x34] sm:$0xf]
    %v1733 = vld [vmem:[%s10 + $0x38] sm:$0xf]
    %v1734 = vld [vmem:[%s10 + $0x3c] sm:$0xf]
    %v1735 = vld [vmem:[%s10 + $0x40] sm:$0xf]
    %v1736 = vld [vmem:[%s10 + $0x44] sm:$0xf]
    %v1737 = vld [vmem:[%s10 + $0x48] sm:$0xf]
    %v1738 = vld [vmem:[%s10 + $0x4c] sm:$0xf]
    %v1739 = vld [vmem:[%s10 + $0x50] sm:$0xf]
    %v1740 = vld [vmem:[%s10 + $0x54] sm:$0xf]
    %v1741 = vld [vmem:[%s10 + $0x58] sm:$0xf]
    %v1742 = vld [vmem:[%s10 + $0x5c] sm:$0xf]
    %v1743 = vld [vmem:[%s10 + $0x60] sm:$0xf]
    %v1744 = vld [vmem:[%s10 + $0x64] sm:$0xf]
    %v1745 = vld [vmem:[%s10 + $0x68] sm:$0xf]
    %v1746 = vld [vmem:[%s10 + $0x6c] sm:$0xf]
    %v1747 = vld [vmem:[%s10 + $0x70] sm:$0xf]
    %v1748 = vld [vmem:[%s10 + $0x74] sm:$0xf]
    %v1749 = vld [vmem:[%s10 + $0x78] sm:$0xf]
    %v1750 = vld [vmem:[%s10 + $0x7c] sm:$0xf]
    %v1751 = vld [vmem:[%s11] sm:$0x1]
    %v1784 = vunpack.c.l.b16 %v1719
    %v1785 = vunpack.c.l.b16 %v1720
    %v1786 = vunpack.c.l.b16 %v1721
    %v1787 = vunpack.c.l.b16 %v1722
    %v1788 = vunpack.c.l.b16 %v1723
    %v1789 = vunpack.c.l.b16 %v1724
    %v1790 = vunpack.c.l.b16 %v1725
    %v1791 = vunpack.c.l.b16 %v1726
    %v1792 = vunpack.c.l.b16 %v1727
    %v1793 = vunpack.c.l.b16 %v1728
    %v1794 = vunpack.c.l.b16 %v1729
    %v1795 = vunpack.c.l.b16 %v1730
    %v1796 = vunpack.c.l.b16 %v1731
    %v1797 = vunpack.c.l.b16 %v1732
    %v1798 = vunpack.c.l.b16 %v1733
    %v1799 = vunpack.c.l.b16 %v1734
    %v1800 = vunpack.c.l.b16 %v1735
    %v1801 = vunpack.c.l.b16 %v1736
    %v1802 = vunpack.c.l.b16 %v1737
    %v1803 = vunpack.c.l.b16 %v1738
    %v1804 = vunpack.c.l.b16 %v1739
    %v1805 = vunpack.c.l.b16 %v1740
    %v1806 = vunpack.c.l.b16 %v1741
    %v1807 = vunpack.c.l.b16 %v1742
    %v1808 = vunpack.c.l.b16 %v1743
    %v1809 = vunpack.c.l.b16 %v1744
    %v1810 = vunpack.c.l.b16 %v1745
    %v1811 = vunpack.c.l.b16 %v1746
    %v1812 = vunpack.c.l.b16 %v1747
    %v1813 = vunpack.c.l.b16 %v1748
    %v1814 = vunpack.c.l.b16 %v1749
    %v1815 = vunpack.c.l.b16 %v1750
    %v1816 = vpack.c.b16 %v1785, %v1784
    %v1817 = vpack.c.b16 %v1787, %v1786
    %v1818 = vpack.c.b16 %v1789, %v1788
    %v1819 = vpack.c.b16 %v1791, %v1790
    %v1820 = vpack.c.b16 %v1793, %v1792
    %v1821 = vpack.c.b16 %v1795, %v1794
    %v1822 = vpack.c.b16 %v1797, %v1796
    %v1823 = vpack.c.b16 %v1799, %v1798
    %v1824 = vpack.c.b16 %v1801, %v1800
    %v1825 = vpack.c.b16 %v1803, %v1802
    %v1826 = vpack.c.b16 %v1805, %v1804
    %v1827 = vpack.c.b16 %v1807, %v1806
    %v1828 = vpack.c.b16 %v1809, %v1808
    %v1829 = vpack.c.b16 %v1811, %v1810
    %v1830 = vpack.c.b16 %v1813, %v1812
    %v1831 = vpack.c.b16 %v1815, %v1814
    %1848 = vmatprep.subr.bf16.mxu0 0
    %1849 = vmatpush1.bf16.msra.mxu0 %v1823
    %1850 = vmatprep.subr.bf16.mxu0 0
    %1851 = vmatpush1.bf16.msra.mxu0 %v1822
    %1852 = vmatprep.subr.bf16.mxu0 0
    %1853 = vmatpush1.bf16.msra.mxu0 %v1821
    %1854 = vmatprep.subr.bf16.mxu0 0
    %1855 = vmatpush1.bf16.msra.mxu0 %v1820
    %1856 = vmatprep.subr.bf16.mxu0 0
    %1857 = vmatpush1.bf16.msra.mxu0 %v1819
    %1858 = vmatprep.subr.bf16.mxu0 0
    %1859 = vmatpush1.bf16.msra.mxu0 %v1818
    %1860 = vmatprep.subr.bf16.mxu0 0
    %1861 = vmatpush1.bf16.msra.mxu0 %v1817
    %1862 = vmatprep.subr.bf16.mxu0 0
    %1863 = vmatpush1.bf16.msra.mxu0 %v1816
    %1864 = vmatprep.subr.bf16.mxu0 0
    %1865 = vmatpush2.bf16.msra.mxu0 %v1831
    %1866 = vmatprep.subr.bf16.mxu0 0
    %1867 = vmatpush2.bf16.msra.mxu0 %v1830
    %1868 = vmatprep.subr.bf16.mxu0 0
    %1869 = vmatpush2.bf16.msra.mxu0 %v1829
    %1870 = vmatprep.subr.bf16.mxu0 0
    %1871 = vmatpush2.bf16.msra.mxu0 %v1828
    %1872 = vmatprep.subr.bf16.mxu0 0
    %1873 = vmatpush2.bf16.msra.mxu0 %v1827
    %1874 = vmatprep.subr.bf16.mxu0 0
    %1875 = vmatpush2.bf16.msra.mxu0 %v1826
    %1876 = vmatprep.subr.bf16.mxu0 0
    %1877 = vmatpush2.bf16.msra.mxu0 %v1825
    %1878 = vmatprep.subr.bf16.mxu0 0
    %1879 = vmatpush2.bf16.msra.mxu0 %v1824
    %1880 = vmatprep.mubr.bf16.mxu0 %v1718
    %1881 = vmatmul.mubr.bf16.gmra.mxu0 %v1717
    %v1882 = vpop.f32.mrf.mxu0
    %v1883 = vadd.f32 %v1751, %v1882
    %v1884 = vpop.f32.mrf.mxu0
    %v1885 = vpop.f32.mrf.mxu0
    %v1886 = vpop.f32.mrf.mxu0
    %1887 = vdwg.mxu0
    %vm1888 = vcmask 57344
    %1889 = vst.msk [vmem:[#allocation9] sm:$0x1] %vm1888, %v1883
    // Predicated region
    $region62: #{tpu_custom_call.1} parent=1 // pred_check
      _
    $region63: #{tpu_custom_call.1} parent=1 // pred_check_branch
      %1891 = sbr.rel (0) target = $region65
    $region64: #{tpu_custom_call.1} parent=1 // pred_region
      %s1893 = ssub.s32 16, 16
      %1894 = vsyncadd [#allocation4], %s1893
      %s1896 = sshll.u32 [#allocation9], 4
      %s1897 = int_to_ptr.vmem [resolvable:$true] %s1896
      %1899 = dma.vmem_to_hbm [thread:$0]  %s1897, 16, %s12, [#allocation4]
    $region65: #{tpu_custom_call.1} parent=1 // pred_fallthru
      _
    // Predicated region
    $region66: #{tpu_custom_call.1} parent=1 // pred_check
      _
    $region67: #{tpu_custom_call.1} parent=1 // pred_check_branch
      %1901 = sbr.rel (0) target = $region69
    $region68: #{tpu_custom_call.1} parent=1 // pred_region
      %1902 = dma.done [#allocation4], 16
    $region69: #{tpu_custom_call.1} parent=1 // pred_fallthru
      _
    %1903 = vsyncpa [#allocation3], 1
    %1904 = vsyncpa [#allocation8], 1
    %1905 = vsyncpa [#allocation4], 1
    %1906 = vsyncpa [#allocation5], 1

</llo_original>
